<compile_context>
chip_gen: v6e
topology: v6e:2x2x1
jax: 0.10.0
libtpu: 0.0.40
codegen_flags: <defaults>
</compile_context>

<pallas_src>
import math

import jax
import jax.numpy as jnp
import numpy as np
from jax.experimental import pallas as pl
from jax.experimental.pallas import tpu as pltpu

# ---------------- config (small, consistent with the module) ----------------
B = 2          # batch
S = 16         # sequence length
D = 32         # hidden_size
H = 4          # num_attention_heads
HD = D // H    # attention_head_size
I = 64         # intermediate_size
LN_EPS = 1e-5  # nn.LayerNorm default
BS = B * S

# NewGELU constants (module uses 0.04475 exactly as written in the spec).
_GELU_SQRT_2_OVER_PI = math.sqrt(2.0 / math.pi)
_GELU_CUBIC_COEF = 0.04475

PARAM_ORDER = ("ln1_g", "ln1_b",
               "wqkv", "bqkv",
               "wo", "bo",
               "ln2_g", "ln2_b",
               "w1", "b1", "w2", "b2")


def _layernorm(x, gamma, beta):
    mu = jnp.mean(x, axis=-1, keepdims=True)
    var = jnp.mean(jnp.square(x - mu), axis=-1, keepdims=True)
    return (x - mu) * jax.lax.rsqrt(var + LN_EPS) * gamma + beta


def _new_gelu(x):
    # 0.5 * x * (1 + tanh(sqrt(2/pi) * (x + 0.04475 * x^3)))  -- cubic on the VPU.
    x3 = x * x * x
    return 0.5 * x * (1.0 + jnp.tanh(_GELU_SQRT_2_OVER_PI * (x + _GELU_CUBIC_COEF * x3)))


# ------------------------------- kernel -------------------------------------
def block_kernel(x_ref,
                 ln1_g_ref, ln1_b_ref,
                 wqkv_ref, bqkv_ref,
                 wo_ref, bo_ref,
                 ln2_g_ref, ln2_b_ref,
                 w1_ref, b1_ref, w2_ref, b2_ref,
                 out_ref):
    x = x_ref[...]                                              # (B*S, D)

    # ---- LayerNorm 1 ----
    h = _layernorm(x, ln1_g_ref[...], ln1_b_ref[...])           # (B*S, D)

    # ---- Fused QKV projection (1/sqrt(HD) folded into the Q columns) ----
    qkv = jnp.dot(h, wqkv_ref[...],
                  preferred_element_type=jnp.float32) + bqkv_ref[...]   # (B*S, 3D)

    # ---- Head-batched attention over n = B*H ----
    def gather_heads(col0):                                     # (B*S, 3D) -> (B*H, S, HD)
        parts = []
        for b in range(B):
            rows = qkv[b * S:(b + 1) * S, :]                    # (S, 3D) sublane slice
            for hh in range(H):
                c = col0 + hh * HD
                parts.append(rows[:, c:c + HD][None])           # (1, S, HD) lane slice
        return jnp.concatenate(parts, axis=0)

    qh = gather_heads(0)                                        # (B*H, S, HD)
    kh = gather_heads(D)
    vh = gather_heads(2 * D)

    scores = jnp.einsum('nqd,nkd->nqk', qh, kh,
                        preferred_element_type=jnp.float32)     # (B*H, S, S)
    m = jnp.max(scores, axis=-1, keepdims=True)
    e = jnp.exp(scores - m)
    denom = jnp.sum(e, axis=-1, keepdims=True)
    probs = e * pl.reciprocal(denom, approx=True)               # attn_dropout: identity
    ctx = jnp.einsum('nqk,nkd->nqd', probs, vh,
                     preferred_element_type=jnp.float32)        # (B*H, S, HD)

    # merge heads back: (B*H, S, HD) -> (B*S, D)
    attn = jnp.concatenate(
        [jnp.concatenate([ctx[b * H + hh] for hh in range(H)], axis=-1)   # (S, D)
         for b in range(B)],
        axis=0)                                                 # (B*S, D)

    # ---- Output projection + residual ----
    attn = jnp.dot(attn, wo_ref[...], preferred_element_type=jnp.float32) + bo_ref[...]
    x1 = x + attn                                               # output_dropout: identity

    # ---- LayerNorm 2 ----
    h2 = _layernorm(x1, ln2_g_ref[...], ln2_b_ref[...])

    # ---- MLP: dense_1 -> NewGELU -> dense_2 ----
    mid = jnp.dot(h2, w1_ref[...], preferred_element_type=jnp.float32) + b1_ref[...]
    mid = _new_gelu(mid)
    mlp = jnp.dot(mid, w2_ref[...], preferred_element_type=jnp.float32) + b2_ref[...]

    out_ref[...] = x1 + mlp                                     # mlp dropout: identity


# ------------------------------ wrapper -------------------------------------
def vit_block(x, kparams):
    """x: (B, S, D) float32. kparams: dict from prepare_kernel_params()."""
    xf = x.reshape(BS, D)                                       # free host-side reshape
    weight_args = [kparams[name] for name in PARAM_ORDER]       # all 2-D arrays

    in_specs = [pl.BlockSpec((BS, D), lambda i: (0, 0))]
    in_specs += [pl.BlockSpec(w.shape, lambda i: (0, 0)) for w in weight_args]

    out = pl.pallas_call(
        block_kernel,
        out_shape=jax.ShapeDtypeStruct((BS, D), jnp.float32),
        grid_spec=pltpu.PrefetchScalarGridSpec(
            num_scalar_prefetch=0,
            grid=(1,),                                          # single step: no per-batch grid overhead
            in_specs=in_specs,
            out_specs=pl.BlockSpec((BS, D), lambda i: (0, 0)),
        ),
        compiler_params=pltpu.CompilerParams(
            dimension_semantics=("arbitrary",)),
    )(xf, *weight_args)
    return out.reshape(B, S, D)


def prepare_kernel_params(p):
    """One-time constant transform of torch-style params for the kernel:
    keep the fused qkv projection and fold 1/sqrt(HD) into its Q columns."""
    scale = 1.0 / math.sqrt(HD)
    col_scale = jnp.concatenate(
        [jnp.full((1, D), scale, jnp.float32), jnp.ones((1, 2 * D), jnp.float32)],
        axis=1)                                                 # (1, 3D)
    return {
        "ln1_g": p["ln1_g"], "ln1_b": p["ln1_b"],
        "wqkv": p["wqkv"] * col_scale,
        "bqkv": p["bqkv"] * col_scale,
        "wo": p["wo"], "bo": p["bo"],
        "ln2_g": p["ln2_g"], "ln2_b": p["ln2_b"],
        "w1": p["w1"], "b1": p["b1"],
        "w2": p["w2"], "b2": p["b2"],
    }


# ---------------- pure-JAX reference (for correctness check) ----------------
def vit_block_ref(x, p):
    h = _layernorm(x, p["ln1_g"], p["ln1_b"])
    qkv = h @ p["wqkv"] + p["bqkv"]
    q, k, v = jnp.split(qkv, 3, axis=-1)

    def split_heads(t):
        return t.reshape(B, S, H, HD).transpose(0, 2, 1, 3)     # (B, H, S, HD)

    qh, kh, vh = split_heads(q), split_heads(k), split_heads(v)
    scores = jnp.einsum("bhqd,bhkd->bhqk", qh, kh) / math.sqrt(HD)
    probs = jax.nn.softmax(scores, axis=-1)
    attn = jnp.einsum("bhqk,bhkd->bhqd", probs, vh)
    attn = attn.transpose(0, 2, 1, 3).reshape(B, S, D)
    attn = attn @ p["wo"] + p["bo"]
    x1 = x + attn
    h2 = _layernorm(x1, p["ln2_g"], p["ln2_b"])
    mid = _new_gelu(h2 @ p["w1"] + p["b1"])
    return x1 + (mid @ p["w2"] + p["b2"])


def init_params(key):
    ks = jax.random.split(key, 8)
    scale = 0.02
    return {
        "ln1_g": jnp.ones((1, D), jnp.float32),
        "ln1_b": jnp.zeros((1, D), jnp.float32),
        "wqkv": scale * jax.random.normal(ks[0], (D, 3 * D), jnp.float32),
        "bqkv": scale * jax.random.normal(ks[1], (1, 3 * D), jnp.float32),
        "wo": scale * jax.random.normal(ks[2], (D, D), jnp.float32),
        "bo": scale * jax.random.normal(ks[3], (1, D), jnp.float32),
        "ln2_g": jnp.ones((1, D), jnp.float32),
        "ln2_b": jnp.zeros((1, D), jnp.float32),
        "w1": scale * jax.random.normal(ks[4], (D, I), jnp.float32),
        "b1": scale * jax.random.normal(ks[5], (1, I), jnp.float32),
        "w2": scale * jax.random.normal(ks[6], (I, D), jnp.float32),
        "b2": scale * jax.random.normal(ks[7], (1, D), jnp.float32),
    }


if __name__ == "__main__":
    key = jax.random.PRNGKey(0)
    k_x, k_p = jax.random.split(key)
    x = jax.random.normal(k_x, (B, S, D), jnp.float32)
    params = init_params(k_p)
    kparams = prepare_kernel_params(params)   # one-time weight prep (fold Q scale into fused qkv)

    out = jax.block_until_ready(vit_block(x, kparams))
    ref = jax.block_until_ready(vit_block_ref(x, params))

    # atol/rtol leave headroom for the approx reciprocal in the softmax denominator.
    np.testing.assert_allclose(np.asarray(out), np.asarray(ref), rtol=1e-4, atol=1e-4)

    print("KERNEL_OK")
</pallas_src>

<mosaic_0001>
module attributes {stable_mosaic.version = 11 : i64} {
  func.func @block_kernel(%arg0: i32, %arg1: memref<32x32xf32, #tpu.memory_space<vmem>>, %arg2: memref<1x32xf32, #tpu.memory_space<vmem>>, %arg3: memref<1x32xf32, #tpu.memory_space<vmem>>, %arg4: memref<32x96xf32, #tpu.memory_space<vmem>>, %arg5: memref<1x96xf32, #tpu.memory_space<vmem>>, %arg6: memref<32x32xf32, #tpu.memory_space<vmem>>, %arg7: memref<1x32xf32, #tpu.memory_space<vmem>>, %arg8: memref<1x32xf32, #tpu.memory_space<vmem>>, %arg9: memref<1x32xf32, #tpu.memory_space<vmem>>, %arg10: memref<32x64xf32, #tpu.memory_space<vmem>>, %arg11: memref<1x64xf32, #tpu.memory_space<vmem>>, %arg12: memref<64x32xf32, #tpu.memory_space<vmem>>, %arg13: memref<1x32xf32, #tpu.memory_space<vmem>>, %arg14: memref<32x32xf32, #tpu.memory_space<vmem>>) attributes {dimension_semantics = [#tpu.dimension_semantics<arbitrary>], iteration_bounds = array<i64: 1>, scalar_prefetch = 0 : i64, scratch_operands = 0 : i64, tpu.core_type = #tpu.core_type<tc>, window_params = [{pipeline_mode = #tpu.pipeline_mode<synchronous>, transform_indices = @transform_0, window_bounds = array<i64: 32, 32>}, {pipeline_mode = #tpu.pipeline_mode<synchronous>, transform_indices = @transform_1, window_bounds = array<i64: 1, 32>}, {pipeline_mode = #tpu.pipeline_mode<synchronous>, transform_indices = @transform_2, window_bounds = array<i64: 1, 32>}, {pipeline_mode = #tpu.pipeline_mode<synchronous>, transform_indices = @transform_3, window_bounds = array<i64: 32, 96>}, {pipeline_mode = #tpu.pipeline_mode<synchronous>, transform_indices = @transform_4, window_bounds = array<i64: 1, 96>}, {pipeline_mode = #tpu.pipeline_mode<synchronous>, transform_indices = @transform_5, window_bounds = array<i64: 32, 32>}, {pipeline_mode = #tpu.pipeline_mode<synchronous>, transform_indices = @transform_6, window_bounds = array<i64: 1, 32>}, {pipeline_mode = #tpu.pipeline_mode<synchronous>, transform_indices = @transform_7, window_bounds = array<i64: 1, 32>}, {pipeline_mode = #tpu.pipeline_mode<synchronous>, transform_indices = @transform_8, window_bounds = array<i64: 1, 32>}, {pipeline_mode = #tpu.pipeline_mode<synchronous>, transform_indices = @transform_9, window_bounds = array<i64: 32, 64>}, {pipeline_mode = #tpu.pipeline_mode<synchronous>, transform_indices = @transform_10, window_bounds = array<i64: 1, 64>}, {pipeline_mode = #tpu.pipeline_mode<synchronous>, transform_indices = @transform_11, window_bounds = array<i64: 64, 32>}, {pipeline_mode = #tpu.pipeline_mode<synchronous>, transform_indices = @transform_12, window_bounds = array<i64: 1, 32>}, {pipeline_mode = #tpu.pipeline_mode<synchronous>, transform_indices = @transform_13, window_bounds = array<i64: 32, 32>}]} {
    %c0 = arith.constant 0 : index
    %c0_0 = arith.constant 0 : index
    %0 = vector.load %arg1[%c0, %c0_0] : memref<32x32xf32, #tpu.memory_space<vmem>>, vector<32x32xf32>
    %c0_1 = arith.constant 0 : index
    %c0_2 = arith.constant 0 : index
    %1 = vector.load %arg2[%c0_1, %c0_2] : memref<1x32xf32, #tpu.memory_space<vmem>>, vector<1x32xf32>
    %c0_3 = arith.constant 0 : index
    %c0_4 = arith.constant 0 : index
    %2 = vector.load %arg3[%c0_3, %c0_4] : memref<1x32xf32, #tpu.memory_space<vmem>>, vector<1x32xf32>
    %cst = arith.constant dense<0.000000e+00> : vector<32xf32>
    %3 = vector.multi_reduction <add>, %0, %cst [1] : vector<32x32xf32> to vector<32xf32>
    %4 = vector.shape_cast %3 : vector<32xf32> to vector<32x1xf32>
    %cst_5 = arith.constant 3.200000e+01 : f32
    %5 = vector.broadcast %cst_5 : f32 to vector<32x1xf32>
    %6 = arith.divf %4, %5 : vector<32x1xf32>
    %7 = vector.broadcast %6 : vector<32x1xf32> to vector<32x32xf32>
    %8 = arith.subf %0, %7 : vector<32x32xf32>
    %9 = arith.mulf %8, %8 : vector<32x32xf32>
    %cst_6 = arith.constant dense<0.000000e+00> : vector<32xf32>
    %10 = vector.multi_reduction <add>, %9, %cst_6 [1] : vector<32x32xf32> to vector<32xf32>
    %11 = vector.shape_cast %10 : vector<32xf32> to vector<32x1xf32>
    %cst_7 = arith.constant 3.200000e+01 : f32
    %12 = vector.broadcast %cst_7 : f32 to vector<32x1xf32>
    %13 = arith.divf %11, %12 : vector<32x1xf32>
    %14 = vector.broadcast %6 : vector<32x1xf32> to vector<32x32xf32>
    %15 = arith.subf %0, %14 : vector<32x32xf32>
    %cst_8 = arith.constant 9.99999974E-6 : f32
    %16 = vector.broadcast %cst_8 : f32 to vector<32x1xf32>
    %17 = arith.addf %13, %16 : vector<32x1xf32>
    %18 = math.rsqrt %17 : vector<32x1xf32>
    %19 = vector.broadcast %18 : vector<32x1xf32> to vector<32x32xf32>
    %20 = arith.mulf %15, %19 : vector<32x32xf32>
    %21 = vector.broadcast %1 : vector<1x32xf32> to vector<32x32xf32>
    %22 = arith.mulf %20, %21 : vector<32x32xf32>
    %23 = vector.broadcast %2 : vector<1x32xf32> to vector<32x32xf32>
    %24 = arith.addf %22, %23 : vector<32x32xf32>
    %c0_9 = arith.constant 0 : index
    %c0_10 = arith.constant 0 : index
    %25 = vector.load %arg4[%c0_9, %c0_10] : memref<32x96xf32, #tpu.memory_space<vmem>>, vector<32x96xf32>
    %cst_11 = arith.constant dense<0.000000e+00> : vector<32x96xf32>
    %26 = tpu.matmul %24, %25, %cst_11 {dimension_numbers = #tpu.dot_dimension_numbers<[1], [0], [0], [1], [0, 0, 1, 1], [], []>} : vector<32x32xf32>, vector<32x96xf32>, vector<32x96xf32> -> vector<32x96xf32>
    %c0_12 = arith.constant 0 : index
    %c0_13 = arith.constant 0 : index
    %27 = vector.load %arg5[%c0_12, %c0_13] : memref<1x96xf32, #tpu.memory_space<vmem>>, vector<1x96xf32>
    %28 = vector.broadcast %27 : vector<1x96xf32> to vector<32x96xf32>
    %29 = arith.addf %26, %28 : vector<32x96xf32>
    %30 = vector.extract_strided_slice %29 {offsets = [0, 0], sizes = [16, 96], strides = [1, 1]} : vector<32x96xf32> to vector<16x96xf32>
    %31 = vector.extract_strided_slice %30 {offsets = [0, 0], sizes = [16, 8], strides = [1, 1]} : vector<16x96xf32> to vector<16x8xf32>
    %32 = vector.shape_cast %31 : vector<16x8xf32> to vector<1x16x8xf32>
    %33 = vector.extract_strided_slice %30 {offsets = [0, 8], sizes = [16, 8], strides = [1, 1]} : vector<16x96xf32> to vector<16x8xf32>
    %34 = vector.shape_cast %33 : vector<16x8xf32> to vector<1x16x8xf32>
    %35 = vector.extract_strided_slice %30 {offsets = [0, 16], sizes = [16, 8], strides = [1, 1]} : vector<16x96xf32> to vector<16x8xf32>
    %36 = vector.shape_cast %35 : vector<16x8xf32> to vector<1x16x8xf32>
    %37 = vector.extract_strided_slice %30 {offsets = [0, 24], sizes = [16, 8], strides = [1, 1]} : vector<16x96xf32> to vector<16x8xf32>
    %38 = vector.shape_cast %37 : vector<16x8xf32> to vector<1x16x8xf32>
    %39 = vector.extract_strided_slice %29 {offsets = [16, 0], sizes = [16, 96], strides = [1, 1]} : vector<32x96xf32> to vector<16x96xf32>
    %40 = vector.extract_strided_slice %39 {offsets = [0, 0], sizes = [16, 8], strides = [1, 1]} : vector<16x96xf32> to vector<16x8xf32>
    %41 = vector.shape_cast %40 : vector<16x8xf32> to vector<1x16x8xf32>
    %42 = vector.extract_strided_slice %39 {offsets = [0, 8], sizes = [16, 8], strides = [1, 1]} : vector<16x96xf32> to vector<16x8xf32>
    %43 = vector.shape_cast %42 : vector<16x8xf32> to vector<1x16x8xf32>
    %44 = vector.extract_strided_slice %39 {offsets = [0, 16], sizes = [16, 8], strides = [1, 1]} : vector<16x96xf32> to vector<16x8xf32>
    %45 = vector.shape_cast %44 : vector<16x8xf32> to vector<1x16x8xf32>
    %46 = vector.extract_strided_slice %39 {offsets = [0, 24], sizes = [16, 8], strides = [1, 1]} : vector<16x96xf32> to vector<16x8xf32>
    %47 = vector.shape_cast %46 : vector<16x8xf32> to vector<1x16x8xf32>
    %48 = tpu.concatenate %32, %34, %36, %38, %41, %43, %45, %47 in 0 : vector<1x16x8xf32>, vector<1x16x8xf32>, vector<1x16x8xf32>, vector<1x16x8xf32>, vector<1x16x8xf32>, vector<1x16x8xf32>, vector<1x16x8xf32>, vector<1x16x8xf32> -> vector<8x16x8xf32>
    %49 = vector.extract_strided_slice %29 {offsets = [0, 0], sizes = [16, 96], strides = [1, 1]} : vector<32x96xf32> to vector<16x96xf32>
    %50 = vector.extract_strided_slice %49 {offsets = [0, 32], sizes = [16, 8], strides = [1, 1]} : vector<16x96xf32> to vector<16x8xf32>
    %51 = vector.shape_cast %50 : vector<16x8xf32> to vector<1x16x8xf32>
    %52 = vector.extract_strided_slice %49 {offsets = [0, 40], sizes = [16, 8], strides = [1, 1]} : vector<16x96xf32> to vector<16x8xf32>
    %53 = vector.shape_cast %52 : vector<16x8xf32> to vector<1x16x8xf32>
    %54 = vector.extract_strided_slice %49 {offsets = [0, 48], sizes = [16, 8], strides = [1, 1]} : vector<16x96xf32> to vector<16x8xf32>
    %55 = vector.shape_cast %54 : vector<16x8xf32> to vector<1x16x8xf32>
    %56 = vector.extract_strided_slice %49 {offsets = [0, 56], sizes = [16, 8], strides = [1, 1]} : vector<16x96xf32> to vector<16x8xf32>
    %57 = vector.shape_cast %56 : vector<16x8xf32> to vector<1x16x8xf32>
    %58 = vector.extract_strided_slice %29 {offsets = [16, 0], sizes = [16, 96], strides = [1, 1]} : vector<32x96xf32> to vector<16x96xf32>
    %59 = vector.extract_strided_slice %58 {offsets = [0, 32], sizes = [16, 8], strides = [1, 1]} : vector<16x96xf32> to vector<16x8xf32>
    %60 = vector.shape_cast %59 : vector<16x8xf32> to vector<1x16x8xf32>
    %61 = vector.extract_strided_slice %58 {offsets = [0, 40], sizes = [16, 8], strides = [1, 1]} : vector<16x96xf32> to vector<16x8xf32>
    %62 = vector.shape_cast %61 : vector<16x8xf32> to vector<1x16x8xf32>
    %63 = vector.extract_strided_slice %58 {offsets = [0, 48], sizes = [16, 8], strides = [1, 1]} : vector<16x96xf32> to vector<16x8xf32>
    %64 = vector.shape_cast %63 : vector<16x8xf32> to vector<1x16x8xf32>
    %65 = vector.extract_strided_slice %58 {offsets = [0, 56], sizes = [16, 8], strides = [1, 1]} : vector<16x96xf32> to vector<16x8xf32>
    %66 = vector.shape_cast %65 : vector<16x8xf32> to vector<1x16x8xf32>
    %67 = tpu.concatenate %51, %53, %55, %57, %60, %62, %64, %66 in 0 : vector<1x16x8xf32>, vector<1x16x8xf32>, vector<1x16x8xf32>, vector<1x16x8xf32>, vector<1x16x8xf32>, vector<1x16x8xf32>, vector<1x16x8xf32>, vector<1x16x8xf32> -> vector<8x16x8xf32>
    %68 = vector.extract_strided_slice %29 {offsets = [0, 0], sizes = [16, 96], strides = [1, 1]} : vector<32x96xf32> to vector<16x96xf32>
    %69 = vector.extract_strided_slice %68 {offsets = [0, 64], sizes = [16, 8], strides = [1, 1]} : vector<16x96xf32> to vector<16x8xf32>
    %70 = vector.shape_cast %69 : vector<16x8xf32> to vector<1x16x8xf32>
    %71 = vector.extract_strided_slice %68 {offsets = [0, 72], sizes = [16, 8], strides = [1, 1]} : vector<16x96xf32> to vector<16x8xf32>
    %72 = vector.shape_cast %71 : vector<16x8xf32> to vector<1x16x8xf32>
    %73 = vector.extract_strided_slice %68 {offsets = [0, 80], sizes = [16, 8], strides = [1, 1]} : vector<16x96xf32> to vector<16x8xf32>
    %74 = vector.shape_cast %73 : vector<16x8xf32> to vector<1x16x8xf32>
    %75 = vector.extract_strided_slice %68 {offsets = [0, 88], sizes = [16, 8], strides = [1, 1]} : vector<16x96xf32> to vector<16x8xf32>
    %76 = vector.shape_cast %75 : vector<16x8xf32> to vector<1x16x8xf32>
    %77 = vector.extract_strided_slice %29 {offsets = [16, 0], sizes = [16, 96], strides = [1, 1]} : vector<32x96xf32> to vector<16x96xf32>
    %78 = vector.extract_strided_slice %77 {offsets = [0, 64], sizes = [16, 8], strides = [1, 1]} : vector<16x96xf32> to vector<16x8xf32>
    %79 = vector.shape_cast %78 : vector<16x8xf32> to vector<1x16x8xf32>
    %80 = vector.extract_strided_slice %77 {offsets = [0, 72], sizes = [16, 8], strides = [1, 1]} : vector<16x96xf32> to vector<16x8xf32>
    %81 = vector.shape_cast %80 : vector<16x8xf32> to vector<1x16x8xf32>
    %82 = vector.extract_strided_slice %77 {offsets = [0, 80], sizes = [16, 8], strides = [1, 1]} : vector<16x96xf32> to vector<16x8xf32>
    %83 = vector.shape_cast %82 : vector<16x8xf32> to vector<1x16x8xf32>
    %84 = vector.extract_strided_slice %77 {offsets = [0, 88], sizes = [16, 8], strides = [1, 1]} : vector<16x96xf32> to vector<16x8xf32>
    %85 = vector.shape_cast %84 : vector<16x8xf32> to vector<1x16x8xf32>
    %86 = tpu.concatenate %70, %72, %74, %76, %79, %81, %83, %85 in 0 : vector<1x16x8xf32>, vector<1x16x8xf32>, vector<1x16x8xf32>, vector<1x16x8xf32>, vector<1x16x8xf32>, vector<1x16x8xf32>, vector<1x16x8xf32>, vector<1x16x8xf32> -> vector<8x16x8xf32>
    "tpu.trace_start"() <{level = 10 : i32, message = "nqd,nkd->nqk"}> : () -> ()
    %cst_14 = arith.constant dense<0.000000e+00> : vector<8x16x16xf32>
    %87 = tpu.matmul %48, %67, %cst_14 {dimension_numbers = #tpu.dot_dimension_numbers<[2], [2], [1], [1], [0, 0, 0, 1, 1, 1], [0], [0]>} : vector<8x16x8xf32>, vector<8x16x8xf32>, vector<8x16x16xf32> -> vector<8x16x16xf32>
    "tpu.trace_stop"() : () -> ()
    %cst_15 = arith.constant dense<0xFF800000> : vector<8x16xf32>
    %88 = vector.multi_reduction <maximumf>, %87, %cst_15 [2] : vector<8x16x16xf32> to vector<8x16xf32>
    %89 = vector.shape_cast %88 : vector<8x16xf32> to vector<8x16x1xf32>
    %90 = vector.broadcast %89 : vector<8x16x1xf32> to vector<8x16x16xf32>
    %91 = arith.subf %87, %90 : vector<8x16x16xf32>
    %92 = math.exp %91 : vector<8x16x16xf32>
    %cst_16 = arith.constant dense<0.000000e+00> : vector<8x16xf32>
    %93 = vector.multi_reduction <add>, %92, %cst_16 [2] : vector<8x16x16xf32> to vector<8x16xf32>
    %94 = vector.shape_cast %93 : vector<8x16xf32> to vector<8x16x1xf32>
    %95 = tpu.reciprocal %94 {approx = true} : vector<8x16x1xf32> -> vector<8x16x1xf32>
    %96 = vector.broadcast %95 : vector<8x16x1xf32> to vector<8x16x16xf32>
    %97 = arith.mulf %92, %96 : vector<8x16x16xf32>
    "tpu.trace_start"() <{level = 10 : i32, message = "nqk,nkd->nqd"}> : () -> ()
    %cst_17 = arith.constant dense<0.000000e+00> : vector<8x16x8xf32>
    %98 = tpu.matmul %97, %86, %cst_17 {dimension_numbers = #tpu.dot_dimension_numbers<[2], [1], [1], [2], [0, 0, 0, 1, 1, 2], [0], [0]>} : vector<8x16x16xf32>, vector<8x16x8xf32>, vector<8x16x8xf32> -> vector<8x16x8xf32>
    "tpu.trace_stop"() : () -> ()
    %99 = vector.extract_strided_slice %98 {offsets = [0, 0, 0], sizes = [1, 16, 8], strides = [1, 1, 1]} : vector<8x16x8xf32> to vector<1x16x8xf32>
    %100 = vector.shape_cast %99 : vector<1x16x8xf32> to vector<16x8xf32>
    %101 = vector.extract_strided_slice %98 {offsets = [1, 0, 0], sizes = [1, 16, 8], strides = [1, 1, 1]} : vector<8x16x8xf32> to vector<1x16x8xf32>
    %102 = vector.shape_cast %101 : vector<1x16x8xf32> to vector<16x8xf32>
    %103 = vector.extract_strided_slice %98 {offsets = [2, 0, 0], sizes = [1, 16, 8], strides = [1, 1, 1]} : vector<8x16x8xf32> to vector<1x16x8xf32>
    %104 = vector.shape_cast %103 : vector<1x16x8xf32> to vector<16x8xf32>
    %105 = vector.extract_strided_slice %98 {offsets = [3, 0, 0], sizes = [1, 16, 8], strides = [1, 1, 1]} : vector<8x16x8xf32> to vector<1x16x8xf32>
    %106 = vector.shape_cast %105 : vector<1x16x8xf32> to vector<16x8xf32>
    %107 = tpu.concatenate %100, %102, %104, %106 in 1 : vector<16x8xf32>, vector<16x8xf32>, vector<16x8xf32>, vector<16x8xf32> -> vector<16x32xf32>
    %108 = vector.extract_strided_slice %98 {offsets = [4, 0, 0], sizes = [1, 16, 8], strides = [1, 1, 1]} : vector<8x16x8xf32> to vector<1x16x8xf32>
    %109 = vector.shape_cast %108 : vector<1x16x8xf32> to vector<16x8xf32>
    %110 = vector.extract_strided_slice %98 {offsets = [5, 0, 0], sizes = [1, 16, 8], strides = [1, 1, 1]} : vector<8x16x8xf32> to vector<1x16x8xf32>
    %111 = vector.shape_cast %110 : vector<1x16x8xf32> to vector<16x8xf32>
    %112 = vector.extract_strided_slice %98 {offsets = [6, 0, 0], sizes = [1, 16, 8], strides = [1, 1, 1]} : vector<8x16x8xf32> to vector<1x16x8xf32>
    %113 = vector.shape_cast %112 : vector<1x16x8xf32> to vector<16x8xf32>
    %114 = vector.extract_strided_slice %98 {offsets = [7, 0, 0], sizes = [1, 16, 8], strides = [1, 1, 1]} : vector<8x16x8xf32> to vector<1x16x8xf32>
    %115 = vector.shape_cast %114 : vector<1x16x8xf32> to vector<16x8xf32>
    %116 = tpu.concatenate %109, %111, %113, %115 in 1 : vector<16x8xf32>, vector<16x8xf32>, vector<16x8xf32>, vector<16x8xf32> -> vector<16x32xf32>
    %117 = tpu.concatenate %107, %116 in 0 : vector<16x32xf32>, vector<16x32xf32> -> vector<32x32xf32>
    %c0_18 = arith.constant 0 : index
    %c0_19 = arith.constant 0 : index
    %118 = vector.load %arg6[%c0_18, %c0_19] : memref<32x32xf32, #tpu.memory_space<vmem>>, vector<32x32xf32>
    %cst_20 = arith.constant dense<0.000000e+00> : vector<32x32xf32>
    %119 = tpu.matmul %117, %118, %cst_20 {dimension_numbers = #tpu.dot_dimension_numbers<[1], [0], [0], [1], [0, 0, 1, 1], [], []>} : vector<32x32xf32>, vector<32x32xf32>, vector<32x32xf32> -> vector<32x32xf32>
    %c0_21 = arith.constant 0 : index
    %c0_22 = arith.constant 0 : index
    %120 = vector.load %arg7[%c0_21, %c0_22] : memref<1x32xf32, #tpu.memory_space<vmem>>, vector<1x32xf32>
    %121 = vector.broadcast %120 : vector<1x32xf32> to vector<32x32xf32>
    %122 = arith.addf %119, %121 : vector<32x32xf32>
    %123 = arith.addf %0, %122 : vector<32x32xf32>
    %c0_23 = arith.constant 0 : index
    %c0_24 = arith.constant 0 : index
    %124 = vector.load %arg8[%c0_23, %c0_24] : memref<1x32xf32, #tpu.memory_space<vmem>>, vector<1x32xf32>
    %c0_25 = arith.constant 0 : index
    %c0_26 = arith.constant 0 : index
    %125 = vector.load %arg9[%c0_25, %c0_26] : memref<1x32xf32, #tpu.memory_space<vmem>>, vector<1x32xf32>
    %cst_27 = arith.constant dense<0.000000e+00> : vector<32xf32>
    %126 = vector.multi_reduction <add>, %123, %cst_27 [1] : vector<32x32xf32> to vector<32xf32>
    %127 = vector.shape_cast %126 : vector<32xf32> to vector<32x1xf32>
    %cst_28 = arith.constant 3.200000e+01 : f32
    %128 = vector.broadcast %cst_28 : f32 to vector<32x1xf32>
    %129 = arith.divf %127, %128 : vector<32x1xf32>
    %130 = vector.broadcast %129 : vector<32x1xf32> to vector<32x32xf32>
    %131 = arith.subf %123, %130 : vector<32x32xf32>
    %132 = arith.mulf %131, %131 : vector<32x32xf32>
    %cst_29 = arith.constant dense<0.000000e+00> : vector<32xf32>
    %133 = vector.multi_reduction <add>, %132, %cst_29 [1] : vector<32x32xf32> to vector<32xf32>
    %134 = vector.shape_cast %133 : vector<32xf32> to vector<32x1xf32>
    %cst_30 = arith.constant 3.200000e+01 : f32
    %135 = vector.broadcast %cst_30 : f32 to vector<32x1xf32>
    %136 = arith.divf %134, %135 : vector<32x1xf32>
    %137 = vector.broadcast %129 : vector<32x1xf32> to vector<32x32xf32>
    %138 = arith.subf %123, %137 : vector<32x32xf32>
    %cst_31 = arith.constant 9.99999974E-6 : f32
    %139 = vector.broadcast %cst_31 : f32 to vector<32x1xf32>
    %140 = arith.addf %136, %139 : vector<32x1xf32>
    %141 = math.rsqrt %140 : vector<32x1xf32>
    %142 = vector.broadcast %141 : vector<32x1xf32> to vector<32x32xf32>
    %143 = arith.mulf %138, %142 : vector<32x32xf32>
    %144 = vector.broadcast %124 : vector<1x32xf32> to vector<32x32xf32>
    %145 = arith.mulf %143, %144 : vector<32x32xf32>
    %146 = vector.broadcast %125 : vector<1x32xf32> to vector<32x32xf32>
    %147 = arith.addf %145, %146 : vector<32x32xf32>
    %c0_32 = arith.constant 0 : index
    %c0_33 = arith.constant 0 : index
    %148 = vector.load %arg10[%c0_32, %c0_33] : memref<32x64xf32, #tpu.memory_space<vmem>>, vector<32x64xf32>
    %cst_34 = arith.constant dense<0.000000e+00> : vector<32x64xf32>
    %149 = tpu.matmul %147, %148, %cst_34 {dimension_numbers = #tpu.dot_dimension_numbers<[1], [0], [0], [1], [0, 0, 1, 1], [], []>} : vector<32x32xf32>, vector<32x64xf32>, vector<32x64xf32> -> vector<32x64xf32>
    %c0_35 = arith.constant 0 : index
    %c0_36 = arith.constant 0 : index
    %150 = vector.load %arg11[%c0_35, %c0_36] : memref<1x64xf32, #tpu.memory_space<vmem>>, vector<1x64xf32>
    %151 = vector.broadcast %150 : vector<1x64xf32> to vector<32x64xf32>
    %152 = arith.addf %149, %151 : vector<32x64xf32>
    %153 = arith.mulf %152, %152 : vector<32x64xf32>
    %154 = arith.mulf %153, %152 : vector<32x64xf32>
    %cst_37 = arith.constant 5.000000e-01 : f32
    %155 = vector.broadcast %cst_37 : f32 to vector<32x64xf32>
    %156 = arith.mulf %155, %152 : vector<32x64xf32>
    %cst_38 = arith.constant 4.475000e-02 : f32
    %157 = vector.broadcast %cst_38 : f32 to vector<32x64xf32>
    %158 = arith.mulf %157, %154 : vector<32x64xf32>
    %159 = arith.addf %152, %158 : vector<32x64xf32>
    %cst_39 = arith.constant 0.797884583 : f32
    %160 = vector.broadcast %cst_39 : f32 to vector<32x64xf32>
    %161 = arith.mulf %160, %159 : vector<32x64xf32>
    %162 = math.tanh %161 : vector<32x64xf32>
    %cst_40 = arith.constant 1.000000e+00 : f32
    %163 = vector.broadcast %cst_40 : f32 to vector<32x64xf32>
    %164 = arith.addf %163, %162 : vector<32x64xf32>
    %165 = arith.mulf %156, %164 : vector<32x64xf32>
    %c0_41 = arith.constant 0 : index
    %c0_42 = arith.constant 0 : index
    %166 = vector.load %arg12[%c0_41, %c0_42] : memref<64x32xf32, #tpu.memory_space<vmem>>, vector<64x32xf32>
    %cst_43 = arith.constant dense<0.000000e+00> : vector<32x32xf32>
    %167 = tpu.matmul %165, %166, %cst_43 {dimension_numbers = #tpu.dot_dimension_numbers<[1], [0], [0], [1], [0, 0, 1, 1], [], []>} : vector<32x64xf32>, vector<64x32xf32>, vector<32x32xf32> -> vector<32x32xf32>
    %c0_44 = arith.constant 0 : index
    %c0_45 = arith.constant 0 : index
    %168 = vector.load %arg13[%c0_44, %c0_45] : memref<1x32xf32, #tpu.memory_space<vmem>>, vector<1x32xf32>
    %169 = vector.broadcast %168 : vector<1x32xf32> to vector<32x32xf32>
    %170 = arith.addf %167, %169 : vector<32x32xf32>
    %171 = arith.addf %123, %170 : vector<32x32xf32>
    %c0_46 = arith.constant 0 : index
    %c0_47 = arith.constant 0 : index
    %172 = vector.load %arg14[%c0_46, %c0_47] : memref<32x32xf32, #tpu.memory_space<vmem>>, vector<32x32xf32>
    tpu.vector_store %arg14[%c0_46, %c0_47], %171 {strides = array<i32>} : memref<32x32xf32, #tpu.memory_space<vmem>>, vector<32x32xf32>,
    return
  }
  func.func @transform_0(%arg0: i32) -> (i32, i32) {
    %c0_i32 = arith.constant 0 : i32
    %c0_i32_0 = arith.constant 0 : i32
    %c0_i32_1 = arith.constant 0 : i32
    return %c0_i32, %c0_i32_0 : i32, i32
  }
  func.func @transform_1(%arg0: i32) -> (i32, i32) {
    %c0_i32 = arith.constant 0 : i32
    %c0_i32_0 = arith.constant 0 : i32
    %c0_i32_1 = arith.constant 0 : i32
    return %c0_i32, %c0_i32_0 : i32, i32
  }
  func.func @transform_2(%arg0: i32) -> (i32, i32) {
    %c0_i32 = arith.constant 0 : i32
    %c0_i32_0 = arith.constant 0 : i32
    %c0_i32_1 = arith.constant 0 : i32
    return %c0_i32, %c0_i32_0 : i32, i32
  }
  func.func @transform_3(%arg0: i32) -> (i32, i32) {
    %c0_i32 = arith.constant 0 : i32
    %c0_i32_0 = arith.constant 0 : i32
    %c0_i32_1 = arith.constant 0 : i32
    return %c0_i32, %c0_i32_0 : i32, i32
  }
  func.func @transform_4(%arg0: i32) -> (i32, i32) {
    %c0_i32 = arith.constant 0 : i32
    %c0_i32_0 = arith.constant 0 : i32
    %c0_i32_1 = arith.constant 0 : i32
    return %c0_i32, %c0_i32_0 : i32, i32
  }
  func.func @transform_5(%arg0: i32) -> (i32, i32) {
    %c0_i32 = arith.constant 0 : i32
    %c0_i32_0 = arith.constant 0 : i32
    %c0_i32_1 = arith.constant 0 : i32
    return %c0_i32, %c0_i32_0 : i32, i32
  }
  func.func @transform_6(%arg0: i32) -> (i32, i32) {
    %c0_i32 = arith.constant 0 : i32
    %c0_i32_0 = arith.constant 0 : i32
    %c0_i32_1 = arith.constant 0 : i32
    return %c0_i32, %c0_i32_0 : i32, i32
  }
  func.func @transform_7(%arg0: i32) -> (i32, i32) {
    %c0_i32 = arith.constant 0 : i32
    %c0_i32_0 = arith.constant 0 : i32
    %c0_i32_1 = arith.constant 0 : i32
    return %c0_i32, %c0_i32_0 : i32, i32
  }
  func.func @transform_8(%arg0: i32) -> (i32, i32) {
    %c0_i32 = arith.constant 0 : i32
    %c0_i32_0 = arith.constant 0 : i32
    %c0_i32_1 = arith.constant 0 : i32
    return %c0_i32, %c0_i32_0 : i32, i32
  }
  func.func @transform_9(%arg0: i32) -> (i32, i32) {
    %c0_i32 = arith.constant 0 : i32
    %c0_i32_0 = arith.constant 0 : i32
    %c0_i32_1 = arith.constant 0 : i32
    return %c0_i32, %c0_i32_0 : i32, i32
  }
  func.func @transform_10(%arg0: i32) -> (i32, i32) {
    %c0_i32 = arith.constant 0 : i32
    %c0_i32_0 = arith.constant 0 : i32
    %c0_i32_1 = arith.constant 0 : i32
    return %c0_i32, %c0_i32_0 : i32, i32
  }
  func.func @transform_11(%arg0: i32) -> (i32, i32) {
    %c0_i32 = arith.constant 0 : i32
    %c0_i32_0 = arith.constant 0 : i32
    %c0_i32_1 = arith.constant 0 : i32
    return %c0_i32, %c0_i32_0 : i32, i32
  }
  func.func @transform_12(%arg0: i32) -> (i32, i32) {
    %c0_i32 = arith.constant 0 : i32
    %c0_i32_0 = arith.constant 0 : i32
    %c0_i32_1 = arith.constant 0 : i32
    return %c0_i32, %c0_i32_0 : i32, i32
  }
  func.func @transform_13(%arg0: i32) -> (i32, i32) {
    %c0_i32 = arith.constant 0 : i32
    %c0_i32_0 = arith.constant 0 : i32
    %c0_i32_1 = arith.constant 0 : i32
    return %c0_i32, %c0_i32_0 : i32, i32
  }
}

</mosaic_0001>

<llo_original>
// kernel: tpu_custom_call.1
$region0: #{tpu_custom_call.1}
  #allocation0 [shape = 'u32[]', space=smem, size = 0x4, offset = 0x4, fixed_abs, tag = 'smem constant byte address 0x4 - core index']
  #allocation1 [shape = 'u32[144,128]{1,0:T(1,128)}', space=vmem, size = 0x12000, scoped, tag = 'internal scratch']
  %s0 = inlined_call_operand.vmem [shape: f32[32,32], index: 0, kind: input, shape index: {}]
  %s1 = inlined_call_operand.vmem [shape: f32[1,32], index: 1, kind: input, shape index: {}]
  %s2 = inlined_call_operand.vmem [shape: f32[1,32], index: 2, kind: input, shape index: {}]
  %s3 = inlined_call_operand.vmem [shape: f32[32,96], index: 3, kind: input, shape index: {}]
  %s4 = inlined_call_operand.vmem [shape: f32[1,96], index: 4, kind: input, shape index: {}]
  %s5 = inlined_call_operand.vmem [shape: f32[32,32], index: 5, kind: input, shape index: {}]
  %s6 = inlined_call_operand.vmem [shape: f32[1,32], index: 6, kind: input, shape index: {}]
  %s7 = inlined_call_operand.vmem [shape: f32[1,32], index: 7, kind: input, shape index: {}]
  %s8 = inlined_call_operand.vmem [shape: f32[1,32], index: 8, kind: input, shape index: {}]
  %s9 = inlined_call_operand.hbm [shape: f32[32,64], index: 9, kind: input, shape index: {}]
  %s10 = inlined_call_operand.vmem [shape: f32[1,64], index: 10, kind: input, shape index: {}]
  %s11 = inlined_call_operand.vmem [shape: f32[64,32], index: 11, kind: input, shape index: {}]
  %s12 = inlined_call_operand.vmem [shape: f32[1,32], index: 12, kind: input, shape index: {}]
  %s13 = inlined_call_operand.hbm [shape: f32[32,32], index: 13, kind: output, shape index: {}]
  %s14 = sld [smem:[#allocation0]]
  $region66: #{tpu_custom_call.1} parent=0
    _
  %s16 = ssub.s32 1, %s14
  %s17 = scalar_select 0, %s16, %s14
  $region1: #{tpu_custom_call.1} parent=0
    #allocation2 [shape = 'u8[16384]{0}', space=vmem, size = 0x4000, scoped, tag = 'input window, operand 9, single buffered']
    #allocation3 [shape = 's32[1]{0}', space=sflag, size = 0x4, scoped, tag = 'scoped memory for tpu_custom_call.1']
    #allocation4 [shape = 's32[1]{0}', space=sflag, size = 0x4, scoped, tag = 'scoped memory for tpu_custom_call.1']
    #allocation5 [shape = 'u8[16384]{0}', space=vmem, size = 0x4000, scoped, tag = 'output window, operand 0, single buffered']
    %18 = vsyncpa [#allocation3], 0
    %19 = vsyncpa [#allocation4], 0
    // Predicated region
    $region2: #{tpu_custom_call.1} parent=1 // pred_check
      _
    $region3: #{tpu_custom_call.1} parent=1 // pred_check_branch
      %21 = sbr.rel (0) target = $region5
    $region4: #{tpu_custom_call.1} parent=1 // pred_region
      _
    $region5: #{tpu_custom_call.1} parent=1 // pred_fallthru
      _
    // Predicated region
    $region6: #{tpu_custom_call.1} parent=1 // pred_check
      _
    $region7: #{tpu_custom_call.1} parent=1 // pred_check_branch
      %23 = sbr.rel (0) target = $region9
    $region8: #{tpu_custom_call.1} parent=1 // pred_region
      _
    $region9: #{tpu_custom_call.1} parent=1 // pred_fallthru
      _
    // Predicated region
    $region10: #{tpu_custom_call.1} parent=1 // pred_check
      _
    $region11: #{tpu_custom_call.1} parent=1 // pred_check_branch
      %25 = sbr.rel (0) target = $region13
    $region12: #{tpu_custom_call.1} parent=1 // pred_region
      _
    $region13: #{tpu_custom_call.1} parent=1 // pred_fallthru
      _
    // Predicated region
    $region14: #{tpu_custom_call.1} parent=1 // pred_check
      _
    $region15: #{tpu_custom_call.1} parent=1 // pred_check_branch
      %27 = sbr.rel (0) target = $region17
    $region16: #{tpu_custom_call.1} parent=1 // pred_region
      _
    $region17: #{tpu_custom_call.1} parent=1 // pred_fallthru
      _
    // Predicated region
    $region18: #{tpu_custom_call.1} parent=1 // pred_check
      _
    $region19: #{tpu_custom_call.1} parent=1 // pred_check_branch
      %29 = sbr.rel (0) target = $region21
    $region20: #{tpu_custom_call.1} parent=1 // pred_region
      _
    $region21: #{tpu_custom_call.1} parent=1 // pred_fallthru
      _
    // Predicated region
    $region22: #{tpu_custom_call.1} parent=1 // pred_check
      _
    $region23: #{tpu_custom_call.1} parent=1 // pred_check_branch
      %31 = sbr.rel (0) target = $region25
    $region24: #{tpu_custom_call.1} parent=1 // pred_region
      _
    $region25: #{tpu_custom_call.1} parent=1 // pred_fallthru
      _
    // Predicated region
    $region26: #{tpu_custom_call.1} parent=1 // pred_check
      _
    $region27: #{tpu_custom_call.1} parent=1 // pred_check_branch
      %33 = sbr.rel (0) target = $region29
    $region28: #{tpu_custom_call.1} parent=1 // pred_region
      _
    $region29: #{tpu_custom_call.1} parent=1 // pred_fallthru
      _
    // Predicated region
    $region30: #{tpu_custom_call.1} parent=1 // pred_check
      _
    $region31: #{tpu_custom_call.1} parent=1 // pred_check_branch
      %35 = sbr.rel (0) target = $region33
    $region32: #{tpu_custom_call.1} parent=1 // pred_region
      _
    $region33: #{tpu_custom_call.1} parent=1 // pred_fallthru
      _
    // Predicated region
    $region34: #{tpu_custom_call.1} parent=1 // pred_check
      _
    $region35: #{tpu_custom_call.1} parent=1 // pred_check_branch
      %37 = sbr.rel (0) target = $region37
    $region36: #{tpu_custom_call.1} parent=1 // pred_region
      _
    $region37: #{tpu_custom_call.1} parent=1 // pred_fallthru
      _
    // Predicated region
    $region38: #{tpu_custom_call.1} parent=1 // pred_check
      _
    $region39: #{tpu_custom_call.1} parent=1 // pred_check_branch
      %39 = sbr.rel (0) target = $region41
    $region40: #{tpu_custom_call.1} parent=1 // pred_region
      %s41 = ssub.s32 512, 512
      %42 = vsyncadd [#allocation3], %s41
      %s43 = sshll.u32 [#allocation2], 4
      %s44 = int_to_ptr.vmem [resolvable:$true] %s43
      %49 = dma.hbm_to_vmem [thread:$0]  %s9, 512, %s44, [#allocation3], 128, 128, 8
    $region41: #{tpu_custom_call.1} parent=1 // pred_fallthru
      _
    // Predicated region
    $region42: #{tpu_custom_call.1} parent=1 // pred_check
      _
    $region43: #{tpu_custom_call.1} parent=1 // pred_check_branch
      %51 = sbr.rel (0) target = $region45
    $region44: #{tpu_custom_call.1} parent=1 // pred_region
      _
    $region45: #{tpu_custom_call.1} parent=1 // pred_fallthru
      _
    // Predicated region
    $region46: #{tpu_custom_call.1} parent=1 // pred_check
      _
    $region47: #{tpu_custom_call.1} parent=1 // pred_check_branch
      %53 = sbr.rel (0) target = $region49
    $region48: #{tpu_custom_call.1} parent=1 // pred_region
      _
    $region49: #{tpu_custom_call.1} parent=1 // pred_fallthru
      _
    // Predicated region
    $region50: #{tpu_custom_call.1} parent=1 // pred_check
      _
    $region51: #{tpu_custom_call.1} parent=1 // pred_check_branch
      %55 = sbr.rel (0) target = $region53
    $region52: #{tpu_custom_call.1} parent=1 // pred_region
      _
    $region53: #{tpu_custom_call.1} parent=1 // pred_fallthru
      _
    // Predicated region
    $region54: #{tpu_custom_call.1} parent=1 // pred_check
      _
    $region55: #{tpu_custom_call.1} parent=1 // pred_check_branch
      %57 = sbr.rel (0) target = $region57
    $region56: #{tpu_custom_call.1} parent=1 // pred_region
      %58 = dma.done [#allocation3], 512
    $region57: #{tpu_custom_call.1} parent=1 // pred_fallthru
      _
    %v59 = vld [vmem:[%s0] sm:$0xff]
    %v60 = vld [vmem:[%s0 + $0x8] sm:$0xff]
    %v61 = vld [vmem:[%s0 + $0x10] sm:$0xff]
    %v62 = vld [vmem:[%s0 + $0x18] sm:$0xff]
    %v63 = vld [vmem:[%s1] sm:$0x1]
    %v64 = vld [vmem:[%s2] sm:$0x1]
    %vm65 = vcmask 261120
    %v66 = vsel %vm65, %v59, 0.0
    %67 = vadd.xlane.f32.xlu0 %v66
    %v68 = vpop.xlane.xlu0 %67
    %v69 = vsel %vm65, %v60, 0.0
    %70 = vadd.xlane.f32.xlu0 %v69
    %v71 = vpop.xlane.xlu0 %70
    %v72 = vsel %vm65, %v61, 0.0
    %73 = vadd.xlane.f32.xlu0 %v72
    %v74 = vpop.xlane.xlu0 %73
    %v75 = vsel %vm65, %v62, 0.0
    %76 = vadd.xlane.f32.xlu0 %v75
    %v77 = vpop.xlane.xlu0 %76
    %v78 = vrcp.pop 32.0
    %v79 = vmul.f32 %v68, %v78
    %v80 = vmul.f32 %v71, %v78
    %v81 = vmul.f32 %v74, %v78
    %v82 = vmul.f32 %v77, %v78
    %v83 = vsub.f32 %v59, %v79
    %v84 = vsub.f32 %v60, %v80
    %v85 = vsub.f32 %v61, %v81
    %v86 = vsub.f32 %v62, %v82
    %v87 = vmul.f32 %v83, %v83
    %v88 = vmul.f32 %v84, %v84
    %v89 = vmul.f32 %v85, %v85
    %v90 = vmul.f32 %v86, %v86
    %v91 = vsel %vm65, %v87, 0.0
    %92 = vadd.xlane.f32.xlu0 %v91
    %v93 = vpop.xlane.xlu0 %92
    %v94 = vsel %vm65, %v88, 0.0
    %95 = vadd.xlane.f32.xlu0 %v94
    %v96 = vpop.xlane.xlu0 %95
    %v97 = vsel %vm65, %v89, 0.0
    %98 = vadd.xlane.f32.xlu0 %v97
    %v99 = vpop.xlane.xlu0 %98
    %v100 = vsel %vm65, %v90, 0.0
    %101 = vadd.xlane.f32.xlu0 %v100
    %v102 = vpop.xlane.xlu0 %101
    %v103 = vmul.f32 %v93, %v78
    %v104 = vmul.f32 %v96, %v78
    %v105 = vmul.f32 %v99, %v78
    %v106 = vmul.f32 %v102, %v78
    %v107 = vadd.f32 %v103, 1e-05
    %v108 = vadd.f32 %v104, 1e-05
    %v109 = vadd.f32 %v105, 1e-05
    %v110 = vadd.f32 %v106, 1e-05
    %v111 = vrsqrt.pop %v107
    %v112 = vrsqrt.pop %v108
    %v113 = vrsqrt.pop %v109
    %v114 = vrsqrt.pop %v110
    %v115 = vmul.f32 %v83, %v111
    %v116 = vmul.f32 %v84, %v112
    %v117 = vmul.f32 %v85, %v113
    %v118 = vmul.f32 %v86, %v114
    %v120 = vlaneseq
    %v121 = vshrl.u32 %v120, 7
    %v122 = vsub.s32 0, %v121
    %v123 = vrot.slane %v63, %v122
    %v125 = vmul.f32 %v115, %v123
    %v126 = vmul.f32 %v116, %v123
    %v127 = vmul.f32 %v117, %v123
    %v128 = vmul.f32 %v118, %v123
    %v130 = vlaneseq
    %v131 = vshrl.u32 %v130, 7
    %v132 = vsub.s32 0, %v131
    %v133 = vrot.slane %v64, %v132
    %v135 = vadd.f32 %v125, %v133
    %v136 = vadd.f32 %v126, %v133
    %v137 = vadd.f32 %v127, %v133
    %v138 = vadd.f32 %v128, %v133
    %v139 = vld [vmem:[%s3] sm:$0xff]
    %v140 = vld [vmem:[%s3 + $0x8] sm:$0xff]
    %v141 = vld [vmem:[%s3 + $0x10] sm:$0xff]
    %v142 = vld [vmem:[%s3 + $0x18] sm:$0xff]
    %v143 = vld [vmem:[%s4] sm:$0x1]
    %v145 = vlaneseq
    %v146 = vshrl.u32 %v145, 7
    %v147 = vsub.s32 0, %v146
    %v148 = vrot.slane %v143, %v147
    %v151 = vsel %vm65, %v135, 0
    %v154 = vsel %vm65, %v136, 0
    %v157 = vsel %vm65, %v137, 0
    %v160 = vsel %vm65, %v138, 0
    %162 = vmatprep.subr.mxu0 0.0
    %163 = vmatpush1.msra.mxu0 0.0
    %164 = vmatprep.subr.mxu0 0.0
    %165 = vmatpush1.msra.mxu0 0.0
    %166 = vmatprep.subr.mxu0 0.0
    %167 = vmatpush1.msra.mxu0 0.0
    %168 = vmatprep.subr.mxu0 0.0
    %169 = vmatpush1.msra.mxu0 0.0
    %170 = vmatprep.subr.mxu0 0.0
    %171 = vmatpush1.msra.mxu0 0.0
    %172 = vmatprep.subr.mxu0 0.0
    %173 = vmatpush1.msra.mxu0 0.0
    %174 = vmatprep.subr.mxu0 0.0
    %175 = vmatpush1.msra.mxu0 0.0
    %176 = vmatprep.subr.mxu0 0.0
    %177 = vmatpush1.msra.mxu0 0.0
    %178 = vmatprep.subr.mxu0 0.0
    %179 = vmatpush1.msra.mxu0 0.0
    %180 = vmatprep.subr.mxu0 0.0
    %181 = vmatpush1.msra.mxu0 0.0
    %182 = vmatprep.subr.mxu0 0.0
    %183 = vmatpush1.msra.mxu0 0.0
    %184 = vmatprep.subr.mxu0 0.0
    %185 = vmatpush1.msra.mxu0 0.0
    %186 = vmatprep.subr.mxu0 0.0
    %187 = vmatpush1.msra.mxu0 %v142
    %188 = vmatprep.subr.mxu0 0.0
    %189 = vmatpush1.msra.mxu0 %v141
    %190 = vmatprep.subr.mxu0 0.0
    %191 = vmatpush1.msra.mxu0 %v140
    %192 = vmatprep.subr.mxu0 0.0
    %193 = vmatpush1.msra.mxu0 %v139
    %194 = vmatprep.subr.mxu0 0.0
    %195 = vmatpush2.msra.mxu0 0.0
    %196 = vmatprep.subr.mxu0 0.0
    %197 = vmatpush2.msra.mxu0 0.0
    %198 = vmatprep.subr.mxu0 0.0
    %199 = vmatpush2.msra.mxu0 0.0
    %200 = vmatprep.subr.mxu0 0.0
    %201 = vmatpush2.msra.mxu0 0.0
    %202 = vmatprep.subr.mxu0 0.0
    %203 = vmatpush2.msra.mxu0 0.0
    %204 = vmatprep.subr.mxu0 0.0
    %205 = vmatpush2.msra.mxu0 0.0
    %206 = vmatprep.subr.mxu0 0.0
    %207 = vmatpush2.msra.mxu0 0.0
    %208 = vmatprep.subr.mxu0 0.0
    %209 = vmatpush2.msra.mxu0 0.0
    %210 = vmatprep.subr.mxu0 0.0
    %211 = vmatpush2.msra.mxu0 0.0
    %212 = vmatprep.subr.mxu0 0.0
    %213 = vmatpush2.msra.mxu0 0.0
    %214 = vmatprep.subr.mxu0 0.0
    %215 = vmatpush2.msra.mxu0 0.0
    %216 = vmatprep.subr.mxu0 0.0
    %217 = vmatpush2.msra.mxu0 0.0
    %218 = vmatprep.subr.mxu0 0.0
    %219 = vmatpush2.msra.mxu0 0.0
    %220 = vmatprep.subr.mxu0 0.0
    %221 = vmatpush2.msra.mxu0 0.0
    %222 = vmatprep.subr.mxu0 0.0
    %223 = vmatpush2.msra.mxu0 0.0
    %224 = vmatprep.subr.mxu0 0.0
    %225 = vmatpush2.msra.mxu0 0.0
    %226 = vmatprep.mubr.f32.mxu0 0.0
    %227 = vmatmul.mubr.f32.gmra.mxu0 %v151
    %v228 = vpop.f32.mrf.mxu0
    %v229 = vadd.f32 %v148, %v228
    %v230 = vpop.f32.mrf.mxu0
    %231 = vmatprep.mubr.f32.mxu0 0.0
    %232 = vmatmul.mubr.f32.gmra.mxu0 %v154
    %v233 = vpop.f32.mrf.mxu0
    %v234 = vadd.f32 %v148, %v233
    %v235 = vpop.f32.mrf.mxu0
    %236 = vmatprep.mubr.f32.mxu0 0.0
    %237 = vmatmul.mubr.f32.gmra.mxu0 %v157
    %v238 = vpop.f32.mrf.mxu0
    %v239 = vadd.f32 %v148, %v238
    %v240 = vpop.f32.mrf.mxu0
    %241 = vmatprep.mubr.f32.mxu0 0.0
    %242 = vmatmul.mubr.f32.gmra.mxu0 %v160
    %v243 = vpop.f32.mrf.mxu0
    %v244 = vadd.f32 %v148, %v243
    %v245 = vpop.f32.mrf.mxu0
    %246 = vdwg.mxu0
    %249 = vrot.lane.b32.xlu0 %v229, 120
    %v250 = vpop.permute.xlu0 %249
    %251 = vrot.lane.b32.xlu0 %v234, 120
    %v252 = vpop.permute.xlu0 %251
    %253 = vrot.lane.b32.xlu0 %v229, 112
    %v254 = vpop.permute.xlu0 %253
    %255 = vrot.lane.b32.xlu0 %v234, 112
    %v256 = vpop.permute.xlu0 %255
    %257 = vrot.lane.b32.xlu0 %v229, 104
    %v258 = vpop.permute.xlu0 %257
    %259 = vrot.lane.b32.xlu0 %v234, 104
    %v260 = vpop.permute.xlu0 %259
    %263 = vrot.lane.b32.xlu0 %v239, 120
    %v264 = vpop.permute.xlu0 %263
    %265 = vrot.lane.b32.xlu0 %v244, 120
    %v266 = vpop.permute.xlu0 %265
    %267 = vrot.lane.b32.xlu0 %v239, 112
    %v268 = vpop.permute.xlu0 %267
    %269 = vrot.lane.b32.xlu0 %v244, 112
    %v270 = vpop.permute.xlu0 %269
    %271 = vrot.lane.b32.xlu0 %v239, 104
    %v272 = vpop.permute.xlu0 %271
    %273 = vrot.lane.b32.xlu0 %v244, 104
    %v274 = vpop.permute.xlu0 %273
    %275 = vrot.lane.b32.xlu0 %v229, 96
    %v276 = vpop.permute.xlu0 %275
    %277 = vrot.lane.b32.xlu0 %v234, 96
    %v278 = vpop.permute.xlu0 %277
    %vm279 = vcmask 64512
    %v280 = vsel %vm279, %v229, 0
    %v282 = vsel %vm279, %v234, 0
    %v284 = vsel %vm279, %v276, 0
    %v286 = vsel %vm279, %v278, 0
    %288 = vmatprep.subr.mxu0 0.0
    %289 = vmatpush1.xpose.msra.mxu0 0.0
    %290 = vmatprep.subr.mxu0 0.0
    %291 = vmatpush1.xpose.msra.mxu0 0.0
    %292 = vmatprep.subr.mxu0 0.0
    %293 = vmatpush1.xpose.msra.mxu0 0.0
    %294 = vmatprep.subr.mxu0 0.0
    %295 = vmatpush1.xpose.msra.mxu0 0.0
    %296 = vmatprep.subr.mxu0 0.0
    %297 = vmatpush1.xpose.msra.mxu0 0.0
    %298 = vmatprep.subr.mxu0 0.0
    %299 = vmatpush1.xpose.msra.mxu0 0.0
    %300 = vmatprep.subr.mxu0 0.0
    %301 = vmatpush1.xpose.msra.mxu0 0.0
    %302 = vmatprep.subr.mxu0 0.0
    %303 = vmatpush1.xpose.msra.mxu0 0.0
    %304 = vmatprep.subr.mxu0 0.0
    %305 = vmatpush1.xpose.msra.mxu0 0.0
    %306 = vmatprep.subr.mxu0 0.0
    %307 = vmatpush1.xpose.msra.mxu0 0.0
    %308 = vmatprep.subr.mxu0 0.0
    %309 = vmatpush1.xpose.msra.mxu0 0.0
    %310 = vmatprep.subr.mxu0 0.0
    %311 = vmatpush1.xpose.msra.mxu0 0.0
    %312 = vmatprep.subr.mxu0 0.0
    %313 = vmatpush1.xpose.msra.mxu0 0.0
    %314 = vmatprep.subr.mxu0 0.0
    %315 = vmatpush1.xpose.msra.mxu0 0.0
    %316 = vmatprep.subr.mxu0 0.0
    %317 = vmatpush1.xpose.msra.mxu0 %v286
    %318 = vmatprep.subr.mxu0 0.0
    %319 = vmatpush1.xpose.msra.mxu0 %v284
    %320 = vmatprep.subr.mxu0 0.0
    %321 = vmatpush2.xpose.msra.mxu0 0.0
    %322 = vmatprep.subr.mxu0 0.0
    %323 = vmatpush2.xpose.msra.mxu0 0.0
    %324 = vmatprep.subr.mxu0 0.0
    %325 = vmatpush2.xpose.msra.mxu0 0.0
    %326 = vmatprep.subr.mxu0 0.0
    %327 = vmatpush2.xpose.msra.mxu0 0.0
    %328 = vmatprep.subr.mxu0 0.0
    %329 = vmatpush2.xpose.msra.mxu0 0.0
    %330 = vmatprep.subr.mxu0 0.0
    %331 = vmatpush2.xpose.msra.mxu0 0.0
    %332 = vmatprep.subr.mxu0 0.0
    %333 = vmatpush2.xpose.msra.mxu0 0.0
    %334 = vmatprep.subr.mxu0 0.0
    %335 = vmatpush2.xpose.msra.mxu0 0.0
    %336 = vmatprep.subr.mxu0 0.0
    %337 = vmatpush2.xpose.msra.mxu0 0.0
    %338 = vmatprep.subr.mxu0 0.0
    %339 = vmatpush2.xpose.msra.mxu0 0.0
    %340 = vmatprep.subr.mxu0 0.0
    %341 = vmatpush2.xpose.msra.mxu0 0.0
    %342 = vmatprep.subr.mxu0 0.0
    %343 = vmatpush2.xpose.msra.mxu0 0.0
    %344 = vmatprep.subr.mxu0 0.0
    %345 = vmatpush2.xpose.msra.mxu0 0.0
    %346 = vmatprep.subr.mxu0 0.0
    %347 = vmatpush2.xpose.msra.mxu0 0.0
    %348 = vmatprep.subr.mxu0 0.0
    %349 = vmatpush2.xpose.msra.mxu0 0.0
    %350 = vmatprep.subr.mxu0 0.0
    %351 = vmatpush2.xpose.msra.mxu0 0.0
    %352 = vmatprep.mubr.f32.mxu0 0.0
    %353 = vmatmul.mubr.f32.gmra.mxu0 %v280
    %v354 = vpop.f32.mrf.mxu0
    %v355 = vadd.f32 0.0, %v354
    %v356 = vpop.f32.mrf.mxu0
    %357 = vmatprep.mubr.f32.mxu0 0.0
    %358 = vmatmul.mubr.f32.gmra.mxu0 %v282
    %v359 = vpop.f32.mrf.mxu0
    %v360 = vadd.f32 0.0, %v359
    %v361 = vpop.f32.mrf.mxu0
    %362 = vdwg.mxu0
    %363 = vrot.lane.b32.xlu0 %v250, 96
    %v364 = vpop.permute.xlu0 %363
    %365 = vrot.lane.b32.xlu0 %v252, 96
    %v366 = vpop.permute.xlu0 %365
    %v367 = vsel %vm279, %v250, 0
    %v369 = vsel %vm279, %v252, 0
    %v371 = vsel %vm279, %v364, 0
    %v373 = vsel %vm279, %v366, 0
    %375 = vmatprep.subr.mxu0 0.0
    %376 = vmatpush1.xpose.msra.mxu0 0.0
    %377 = vmatprep.subr.mxu0 0.0
    %378 = vmatpush1.xpose.msra.mxu0 0.0
    %379 = vmatprep.subr.mxu0 0.0
    %380 = vmatpush1.xpose.msra.mxu0 0.0
    %381 = vmatprep.subr.mxu0 0.0
    %382 = vmatpush1.xpose.msra.mxu0 0.0
    %383 = vmatprep.subr.mxu0 0.0
    %384 = vmatpush1.xpose.msra.mxu0 0.0
    %385 = vmatprep.subr.mxu0 0.0
    %386 = vmatpush1.xpose.msra.mxu0 0.0
    %387 = vmatprep.subr.mxu0 0.0
    %388 = vmatpush1.xpose.msra.mxu0 0.0
    %389 = vmatprep.subr.mxu0 0.0
    %390 = vmatpush1.xpose.msra.mxu0 0.0
    %391 = vmatprep.subr.mxu0 0.0
    %392 = vmatpush1.xpose.msra.mxu0 0.0
    %393 = vmatprep.subr.mxu0 0.0
    %394 = vmatpush1.xpose.msra.mxu0 0.0
    %395 = vmatprep.subr.mxu0 0.0
    %396 = vmatpush1.xpose.msra.mxu0 0.0
    %397 = vmatprep.subr.mxu0 0.0
    %398 = vmatpush1.xpose.msra.mxu0 0.0
    %399 = vmatprep.subr.mxu0 0.0
    %400 = vmatpush1.xpose.msra.mxu0 0.0
    %401 = vmatprep.subr.mxu0 0.0
    %402 = vmatpush1.xpose.msra.mxu0 0.0
    %403 = vmatprep.subr.mxu0 0.0
    %404 = vmatpush1.xpose.msra.mxu0 %v373
    %405 = vmatprep.subr.mxu0 0.0
    %406 = vmatpush1.xpose.msra.mxu0 %v371
    %407 = vmatprep.subr.mxu0 0.0
    %408 = vmatpush2.xpose.msra.mxu0 0.0
    %409 = vmatprep.subr.mxu0 0.0
    %410 = vmatpush2.xpose.msra.mxu0 0.0
    %411 = vmatprep.subr.mxu0 0.0
    %412 = vmatpush2.xpose.msra.mxu0 0.0
    %413 = vmatprep.subr.mxu0 0.0
    %414 = vmatpush2.xpose.msra.mxu0 0.0
    %415 = vmatprep.subr.mxu0 0.0
    %416 = vmatpush2.xpose.msra.mxu0 0.0
    %417 = vmatprep.subr.mxu0 0.0
    %418 = vmatpush2.xpose.msra.mxu0 0.0
    %419 = vmatprep.subr.mxu0 0.0
    %420 = vmatpush2.xpose.msra.mxu0 0.0
    %421 = vmatprep.subr.mxu0 0.0
    %422 = vmatpush2.xpose.msra.mxu0 0.0
    %423 = vmatprep.subr.mxu0 0.0
    %424 = vmatpush2.xpose.msra.mxu0 0.0
    %425 = vmatprep.subr.mxu0 0.0
    %426 = vmatpush2.xpose.msra.mxu0 0.0
    %427 = vmatprep.subr.mxu0 0.0
    %428 = vmatpush2.xpose.msra.mxu0 0.0
    %429 = vmatprep.subr.mxu0 0.0
    %430 = vmatpush2.xpose.msra.mxu0 0.0
    %431 = vmatprep.subr.mxu0 0.0
    %432 = vmatpush2.xpose.msra.mxu0 0.0
    %433 = vmatprep.subr.mxu0 0.0
    %434 = vmatpush2.xpose.msra.mxu0 0.0
    %435 = vmatprep.subr.mxu0 0.0
    %436 = vmatpush2.xpose.msra.mxu0 0.0
    %437 = vmatprep.subr.mxu0 0.0
    %438 = vmatpush2.xpose.msra.mxu0 0.0
    %439 = vmatprep.mubr.f32.mxu0 0.0
    %440 = vmatmul.mubr.f32.gmra.mxu0 %v367
    %v441 = vpop.f32.mrf.mxu0
    %v442 = vadd.f32 0.0, %v441
    %v443 = vpop.f32.mrf.mxu0
    %444 = vmatprep.mubr.f32.mxu0 0.0
    %445 = vmatmul.mubr.f32.gmra.mxu0 %v369
    %v446 = vpop.f32.mrf.mxu0
    %v447 = vadd.f32 0.0, %v446
    %v448 = vpop.f32.mrf.mxu0
    %449 = vdwg.mxu0
    %450 = vrot.lane.b32.xlu0 %v254, 96
    %v451 = vpop.permute.xlu0 %450
    %452 = vrot.lane.b32.xlu0 %v256, 96
    %v453 = vpop.permute.xlu0 %452
    %v454 = vsel %vm279, %v254, 0
    %v456 = vsel %vm279, %v256, 0
    %v458 = vsel %vm279, %v451, 0
    %v460 = vsel %vm279, %v453, 0
    %462 = vmatprep.subr.mxu0 0.0
    %463 = vmatpush1.xpose.msra.mxu0 0.0
    %464 = vmatprep.subr.mxu0 0.0
    %465 = vmatpush1.xpose.msra.mxu0 0.0
    %466 = vmatprep.subr.mxu0 0.0
    %467 = vmatpush1.xpose.msra.mxu0 0.0
    %468 = vmatprep.subr.mxu0 0.0
    %469 = vmatpush1.xpose.msra.mxu0 0.0
    %470 = vmatprep.subr.mxu0 0.0
    %471 = vmatpush1.xpose.msra.mxu0 0.0
    %472 = vmatprep.subr.mxu0 0.0
    %473 = vmatpush1.xpose.msra.mxu0 0.0
    %474 = vmatprep.subr.mxu0 0.0
    %475 = vmatpush1.xpose.msra.mxu0 0.0
    %476 = vmatprep.subr.mxu0 0.0
    %477 = vmatpush1.xpose.msra.mxu0 0.0
    %478 = vmatprep.subr.mxu0 0.0
    %479 = vmatpush1.xpose.msra.mxu0 0.0
    %480 = vmatprep.subr.mxu0 0.0
    %481 = vmatpush1.xpose.msra.mxu0 0.0
    %482 = vmatprep.subr.mxu0 0.0
    %483 = vmatpush1.xpose.msra.mxu0 0.0
    %484 = vmatprep.subr.mxu0 0.0
    %485 = vmatpush1.xpose.msra.mxu0 0.0
    %486 = vmatprep.subr.mxu0 0.0
    %487 = vmatpush1.xpose.msra.mxu0 0.0
    %488 = vmatprep.subr.mxu0 0.0
    %489 = vmatpush1.xpose.msra.mxu0 0.0
    %490 = vmatprep.subr.mxu0 0.0
    %491 = vmatpush1.xpose.msra.mxu0 %v460
    %492 = vmatprep.subr.mxu0 0.0
    %493 = vmatpush1.xpose.msra.mxu0 %v458
    %494 = vmatprep.subr.mxu0 0.0
    %495 = vmatpush2.xpose.msra.mxu0 0.0
    %496 = vmatprep.subr.mxu0 0.0
    %497 = vmatpush2.xpose.msra.mxu0 0.0
    %498 = vmatprep.subr.mxu0 0.0
    %499 = vmatpush2.xpose.msra.mxu0 0.0
    %500 = vmatprep.subr.mxu0 0.0
    %501 = vmatpush2.xpose.msra.mxu0 0.0
    %502 = vmatprep.subr.mxu0 0.0
    %503 = vmatpush2.xpose.msra.mxu0 0.0
    %504 = vmatprep.subr.mxu0 0.0
    %505 = vmatpush2.xpose.msra.mxu0 0.0
    %506 = vmatprep.subr.mxu0 0.0
    %507 = vmatpush2.xpose.msra.mxu0 0.0
    %508 = vmatprep.subr.mxu0 0.0
    %509 = vmatpush2.xpose.msra.mxu0 0.0
    %510 = vmatprep.subr.mxu0 0.0
    %511 = vmatpush2.xpose.msra.mxu0 0.0
    %512 = vmatprep.subr.mxu0 0.0
    %513 = vmatpush2.xpose.msra.mxu0 0.0
    %514 = vmatprep.subr.mxu0 0.0
    %515 = vmatpush2.xpose.msra.mxu0 0.0
    %516 = vmatprep.subr.mxu0 0.0
    %517 = vmatpush2.xpose.msra.mxu0 0.0
    %518 = vmatprep.subr.mxu0 0.0
    %519 = vmatpush2.xpose.msra.mxu0 0.0
    %520 = vmatprep.subr.mxu0 0.0
    %521 = vmatpush2.xpose.msra.mxu0 0.0
    %522 = vmatprep.subr.mxu0 0.0
    %523 = vmatpush2.xpose.msra.mxu0 0.0
    %524 = vmatprep.subr.mxu0 0.0
    %525 = vmatpush2.xpose.msra.mxu0 0.0
    %526 = vmatprep.mubr.f32.mxu0 0.0
    %527 = vmatmul.mubr.f32.gmra.mxu0 %v454
    %v528 = vpop.f32.mrf.mxu0
    %v529 = vadd.f32 0.0, %v528
    %v530 = vpop.f32.mrf.mxu0
    %531 = vmatprep.mubr.f32.mxu0 0.0
    %532 = vmatmul.mubr.f32.gmra.mxu0 %v456
    %v533 = vpop.f32.mrf.mxu0
    %v534 = vadd.f32 0.0, %v533
    %v535 = vpop.f32.mrf.mxu0
    %536 = vdwg.mxu0
    %537 = vrot.lane.b32.xlu0 %v258, 96
    %v538 = vpop.permute.xlu0 %537
    %539 = vrot.lane.b32.xlu0 %v260, 96
    %v540 = vpop.permute.xlu0 %539
    %v541 = vsel %vm279, %v258, 0
    %v543 = vsel %vm279, %v260, 0
    %v545 = vsel %vm279, %v538, 0
    %v547 = vsel %vm279, %v540, 0
    %549 = vmatprep.subr.mxu0 0.0
    %550 = vmatpush1.xpose.msra.mxu0 0.0
    %551 = vmatprep.subr.mxu0 0.0
    %552 = vmatpush1.xpose.msra.mxu0 0.0
    %553 = vmatprep.subr.mxu0 0.0
    %554 = vmatpush1.xpose.msra.mxu0 0.0
    %555 = vmatprep.subr.mxu0 0.0
    %556 = vmatpush1.xpose.msra.mxu0 0.0
    %557 = vmatprep.subr.mxu0 0.0
    %558 = vmatpush1.xpose.msra.mxu0 0.0
    %559 = vmatprep.subr.mxu0 0.0
    %560 = vmatpush1.xpose.msra.mxu0 0.0
    %561 = vmatprep.subr.mxu0 0.0
    %562 = vmatpush1.xpose.msra.mxu0 0.0
    %563 = vmatprep.subr.mxu0 0.0
    %564 = vmatpush1.xpose.msra.mxu0 0.0
    %565 = vmatprep.subr.mxu0 0.0
    %566 = vmatpush1.xpose.msra.mxu0 0.0
    %567 = vmatprep.subr.mxu0 0.0
    %568 = vmatpush1.xpose.msra.mxu0 0.0
    %569 = vmatprep.subr.mxu0 0.0
    %570 = vmatpush1.xpose.msra.mxu0 0.0
    %571 = vmatprep.subr.mxu0 0.0
    %572 = vmatpush1.xpose.msra.mxu0 0.0
    %573 = vmatprep.subr.mxu0 0.0
    %574 = vmatpush1.xpose.msra.mxu0 0.0
    %575 = vmatprep.subr.mxu0 0.0
    %576 = vmatpush1.xpose.msra.mxu0 0.0
    %577 = vmatprep.subr.mxu0 0.0
    %578 = vmatpush1.xpose.msra.mxu0 %v547
    %579 = vmatprep.subr.mxu0 0.0
    %580 = vmatpush1.xpose.msra.mxu0 %v545
    %581 = vmatprep.subr.mxu0 0.0
    %582 = vmatpush2.xpose.msra.mxu0 0.0
    %583 = vmatprep.subr.mxu0 0.0
    %584 = vmatpush2.xpose.msra.mxu0 0.0
    %585 = vmatprep.subr.mxu0 0.0
    %586 = vmatpush2.xpose.msra.mxu0 0.0
    %587 = vmatprep.subr.mxu0 0.0
    %588 = vmatpush2.xpose.msra.mxu0 0.0
    %589 = vmatprep.subr.mxu0 0.0
    %590 = vmatpush2.xpose.msra.mxu0 0.0
    %591 = vmatprep.subr.mxu0 0.0
    %592 = vmatpush2.xpose.msra.mxu0 0.0
    %593 = vmatprep.subr.mxu0 0.0
    %594 = vmatpush2.xpose.msra.mxu0 0.0
    %595 = vmatprep.subr.mxu0 0.0
    %596 = vmatpush2.xpose.msra.mxu0 0.0
    %597 = vmatprep.subr.mxu0 0.0
    %598 = vmatpush2.xpose.msra.mxu0 0.0
    %599 = vmatprep.subr.mxu0 0.0
    %600 = vmatpush2.xpose.msra.mxu0 0.0
    %601 = vmatprep.subr.mxu0 0.0
    %602 = vmatpush2.xpose.msra.mxu0 0.0
    %603 = vmatprep.subr.mxu0 0.0
    %604 = vmatpush2.xpose.msra.mxu0 0.0
    %605 = vmatprep.subr.mxu0 0.0
    %606 = vmatpush2.xpose.msra.mxu0 0.0
    %607 = vmatprep.subr.mxu0 0.0
    %608 = vmatpush2.xpose.msra.mxu0 0.0
    %609 = vmatprep.subr.mxu0 0.0
    %610 = vmatpush2.xpose.msra.mxu0 0.0
    %611 = vmatprep.subr.mxu0 0.0
    %612 = vmatpush2.xpose.msra.mxu0 0.0
    %613 = vmatprep.mubr.f32.mxu0 0.0
    %614 = vmatmul.mubr.f32.gmra.mxu0 %v541
    %v615 = vpop.f32.mrf.mxu0
    %v616 = vadd.f32 0.0, %v615
    %v617 = vpop.f32.mrf.mxu0
    %618 = vmatprep.mubr.f32.mxu0 0.0
    %619 = vmatmul.mubr.f32.gmra.mxu0 %v543
    %v620 = vpop.f32.mrf.mxu0
    %v621 = vadd.f32 0.0, %v620
    %v622 = vpop.f32.mrf.mxu0
    %623 = vdwg.mxu0
    %624 = vrot.lane.b32.xlu0 %v239, 96
    %v625 = vpop.permute.xlu0 %624
    %626 = vrot.lane.b32.xlu0 %v244, 96
    %v627 = vpop.permute.xlu0 %626
    %v628 = vsel %vm279, %v239, 0
    %v630 = vsel %vm279, %v244, 0
    %v632 = vsel %vm279, %v625, 0
    %v634 = vsel %vm279, %v627, 0
    %636 = vmatprep.subr.mxu0 0.0
    %637 = vmatpush1.xpose.msra.mxu0 0.0
    %638 = vmatprep.subr.mxu0 0.0
    %639 = vmatpush1.xpose.msra.mxu0 0.0
    %640 = vmatprep.subr.mxu0 0.0
    %641 = vmatpush1.xpose.msra.mxu0 0.0
    %642 = vmatprep.subr.mxu0 0.0
    %643 = vmatpush1.xpose.msra.mxu0 0.0
    %644 = vmatprep.subr.mxu0 0.0
    %645 = vmatpush1.xpose.msra.mxu0 0.0
    %646 = vmatprep.subr.mxu0 0.0
    %647 = vmatpush1.xpose.msra.mxu0 0.0
    %648 = vmatprep.subr.mxu0 0.0
    %649 = vmatpush1.xpose.msra.mxu0 0.0
    %650 = vmatprep.subr.mxu0 0.0
    %651 = vmatpush1.xpose.msra.mxu0 0.0
    %652 = vmatprep.subr.mxu0 0.0
    %653 = vmatpush1.xpose.msra.mxu0 0.0
    %654 = vmatprep.subr.mxu0 0.0
    %655 = vmatpush1.xpose.msra.mxu0 0.0
    %656 = vmatprep.subr.mxu0 0.0
    %657 = vmatpush1.xpose.msra.mxu0 0.0
    %658 = vmatprep.subr.mxu0 0.0
    %659 = vmatpush1.xpose.msra.mxu0 0.0
    %660 = vmatprep.subr.mxu0 0.0
    %661 = vmatpush1.xpose.msra.mxu0 0.0
    %662 = vmatprep.subr.mxu0 0.0
    %663 = vmatpush1.xpose.msra.mxu0 0.0
    %664 = vmatprep.subr.mxu0 0.0
    %665 = vmatpush1.xpose.msra.mxu0 %v634
    %666 = vmatprep.subr.mxu0 0.0
    %667 = vmatpush1.xpose.msra.mxu0 %v632
    %668 = vmatprep.subr.mxu0 0.0
    %669 = vmatpush2.xpose.msra.mxu0 0.0
    %670 = vmatprep.subr.mxu0 0.0
    %671 = vmatpush2.xpose.msra.mxu0 0.0
    %672 = vmatprep.subr.mxu0 0.0
    %673 = vmatpush2.xpose.msra.mxu0 0.0
    %674 = vmatprep.subr.mxu0 0.0
    %675 = vmatpush2.xpose.msra.mxu0 0.0
    %676 = vmatprep.subr.mxu0 0.0
    %677 = vmatpush2.xpose.msra.mxu0 0.0
    %678 = vmatprep.subr.mxu0 0.0
    %679 = vmatpush2.xpose.msra.mxu0 0.0
    %680 = vmatprep.subr.mxu0 0.0
    %681 = vmatpush2.xpose.msra.mxu0 0.0
    %682 = vmatprep.subr.mxu0 0.0
    %683 = vmatpush2.xpose.msra.mxu0 0.0
    %684 = vmatprep.subr.mxu0 0.0
    %685 = vmatpush2.xpose.msra.mxu0 0.0
    %686 = vmatprep.subr.mxu0 0.0
    %687 = vmatpush2.xpose.msra.mxu0 0.0
    %688 = vmatprep.subr.mxu0 0.0
    %689 = vmatpush2.xpose.msra.mxu0 0.0
    %690 = vmatprep.subr.mxu0 0.0
    %691 = vmatpush2.xpose.msra.mxu0 0.0
    %692 = vmatprep.subr.mxu0 0.0
    %693 = vmatpush2.xpose.msra.mxu0 0.0
    %694 = vmatprep.subr.mxu0 0.0
    %695 = vmatpush2.xpose.msra.mxu0 0.0
    %696 = vmatprep.subr.mxu0 0.0
    %697 = vmatpush2.xpose.msra.mxu0 0.0
    %698 = vmatprep.subr.mxu0 0.0
    %699 = vmatpush2.xpose.msra.mxu0 0.0
    %700 = vmatprep.mubr.f32.mxu0 0.0
    %701 = vmatmul.mubr.f32.gmra.mxu0 %v628
    %v702 = vpop.f32.mrf.mxu0
    %v703 = vadd.f32 0.0, %v702
    %v704 = vpop.f32.mrf.mxu0
    %705 = vmatprep.mubr.f32.mxu0 0.0
    %706 = vmatmul.mubr.f32.gmra.mxu0 %v630
    %v707 = vpop.f32.mrf.mxu0
    %v708 = vadd.f32 0.0, %v707
    %v709 = vpop.f32.mrf.mxu0
    %710 = vdwg.mxu0
    %711 = vrot.lane.b32.xlu0 %v264, 96
    %v712 = vpop.permute.xlu0 %711
    %713 = vrot.lane.b32.xlu0 %v266, 96
    %v714 = vpop.permute.xlu0 %713
    %v715 = vsel %vm279, %v264, 0
    %v717 = vsel %vm279, %v266, 0
    %v719 = vsel %vm279, %v712, 0
    %v721 = vsel %vm279, %v714, 0
    %723 = vmatprep.subr.mxu0 0.0
    %724 = vmatpush1.xpose.msra.mxu0 0.0
    %725 = vmatprep.subr.mxu0 0.0
    %726 = vmatpush1.xpose.msra.mxu0 0.0
    %727 = vmatprep.subr.mxu0 0.0
    %728 = vmatpush1.xpose.msra.mxu0 0.0
    %729 = vmatprep.subr.mxu0 0.0
    %730 = vmatpush1.xpose.msra.mxu0 0.0
    %731 = vmatprep.subr.mxu0 0.0
    %732 = vmatpush1.xpose.msra.mxu0 0.0
    %733 = vmatprep.subr.mxu0 0.0
    %734 = vmatpush1.xpose.msra.mxu0 0.0
    %735 = vmatprep.subr.mxu0 0.0
    %736 = vmatpush1.xpose.msra.mxu0 0.0
    %737 = vmatprep.subr.mxu0 0.0
    %738 = vmatpush1.xpose.msra.mxu0 0.0
    %739 = vmatprep.subr.mxu0 0.0
    %740 = vmatpush1.xpose.msra.mxu0 0.0
    %741 = vmatprep.subr.mxu0 0.0
    %742 = vmatpush1.xpose.msra.mxu0 0.0
    %743 = vmatprep.subr.mxu0 0.0
    %744 = vmatpush1.xpose.msra.mxu0 0.0
    %745 = vmatprep.subr.mxu0 0.0
    %746 = vmatpush1.xpose.msra.mxu0 0.0
    %747 = vmatprep.subr.mxu0 0.0
    %748 = vmatpush1.xpose.msra.mxu0 0.0
    %749 = vmatprep.subr.mxu0 0.0
    %750 = vmatpush1.xpose.msra.mxu0 0.0
    %751 = vmatprep.subr.mxu0 0.0
    %752 = vmatpush1.xpose.msra.mxu0 %v721
    %753 = vmatprep.subr.mxu0 0.0
    %754 = vmatpush1.xpose.msra.mxu0 %v719
    %755 = vmatprep.subr.mxu0 0.0
    %756 = vmatpush2.xpose.msra.mxu0 0.0
    %757 = vmatprep.subr.mxu0 0.0
    %758 = vmatpush2.xpose.msra.mxu0 0.0
    %759 = vmatprep.subr.mxu0 0.0
    %760 = vmatpush2.xpose.msra.mxu0 0.0
    %761 = vmatprep.subr.mxu0 0.0
    %762 = vmatpush2.xpose.msra.mxu0 0.0
    %763 = vmatprep.subr.mxu0 0.0
    %764 = vmatpush2.xpose.msra.mxu0 0.0
    %765 = vmatprep.subr.mxu0 0.0
    %766 = vmatpush2.xpose.msra.mxu0 0.0
    %767 = vmatprep.subr.mxu0 0.0
    %768 = vmatpush2.xpose.msra.mxu0 0.0
    %769 = vmatprep.subr.mxu0 0.0
    %770 = vmatpush2.xpose.msra.mxu0 0.0
    %771 = vmatprep.subr.mxu0 0.0
    %772 = vmatpush2.xpose.msra.mxu0 0.0
    %773 = vmatprep.subr.mxu0 0.0
    %774 = vmatpush2.xpose.msra.mxu0 0.0
    %775 = vmatprep.subr.mxu0 0.0
    %776 = vmatpush2.xpose.msra.mxu0 0.0
    %777 = vmatprep.subr.mxu0 0.0
    %778 = vmatpush2.xpose.msra.mxu0 0.0
    %779 = vmatprep.subr.mxu0 0.0
    %780 = vmatpush2.xpose.msra.mxu0 0.0
    %781 = vmatprep.subr.mxu0 0.0
    %782 = vmatpush2.xpose.msra.mxu0 0.0
    %783 = vmatprep.subr.mxu0 0.0
    %784 = vmatpush2.xpose.msra.mxu0 0.0
    %785 = vmatprep.subr.mxu0 0.0
    %786 = vmatpush2.xpose.msra.mxu0 0.0
    %787 = vmatprep.mubr.f32.mxu0 0.0
    %788 = vmatmul.mubr.f32.gmra.mxu0 %v715
    %v789 = vpop.f32.mrf.mxu0
    %v790 = vadd.f32 0.0, %v789
    %v791 = vpop.f32.mrf.mxu0
    %792 = vmatprep.mubr.f32.mxu0 0.0
    %793 = vmatmul.mubr.f32.gmra.mxu0 %v717
    %v794 = vpop.f32.mrf.mxu0
    %v795 = vadd.f32 0.0, %v794
    %v796 = vpop.f32.mrf.mxu0
    %797 = vdwg.mxu0
    %798 = vrot.lane.b32.xlu0 %v268, 96
    %v799 = vpop.permute.xlu0 %798
    %800 = vrot.lane.b32.xlu0 %v270, 96
    %v801 = vpop.permute.xlu0 %800
    %v802 = vsel %vm279, %v268, 0
    %v804 = vsel %vm279, %v270, 0
    %v806 = vsel %vm279, %v799, 0
    %v808 = vsel %vm279, %v801, 0
    %810 = vmatprep.subr.mxu0 0.0
    %811 = vmatpush1.xpose.msra.mxu0 0.0
    %812 = vmatprep.subr.mxu0 0.0
    %813 = vmatpush1.xpose.msra.mxu0 0.0
    %814 = vmatprep.subr.mxu0 0.0
    %815 = vmatpush1.xpose.msra.mxu0 0.0
    %816 = vmatprep.subr.mxu0 0.0
    %817 = vmatpush1.xpose.msra.mxu0 0.0
    %818 = vmatprep.subr.mxu0 0.0
    %819 = vmatpush1.xpose.msra.mxu0 0.0
    %820 = vmatprep.subr.mxu0 0.0
    %821 = vmatpush1.xpose.msra.mxu0 0.0
    %822 = vmatprep.subr.mxu0 0.0
    %823 = vmatpush1.xpose.msra.mxu0 0.0
    %824 = vmatprep.subr.mxu0 0.0
    %825 = vmatpush1.xpose.msra.mxu0 0.0
    %826 = vmatprep.subr.mxu0 0.0
    %827 = vmatpush1.xpose.msra.mxu0 0.0
    %828 = vmatprep.subr.mxu0 0.0
    %829 = vmatpush1.xpose.msra.mxu0 0.0
    %830 = vmatprep.subr.mxu0 0.0
    %831 = vmatpush1.xpose.msra.mxu0 0.0
    %832 = vmatprep.subr.mxu0 0.0
    %833 = vmatpush1.xpose.msra.mxu0 0.0
    %834 = vmatprep.subr.mxu0 0.0
    %835 = vmatpush1.xpose.msra.mxu0 0.0
    %836 = vmatprep.subr.mxu0 0.0
    %837 = vmatpush1.xpose.msra.mxu0 0.0
    %838 = vmatprep.subr.mxu0 0.0
    %839 = vmatpush1.xpose.msra.mxu0 %v808
    %840 = vmatprep.subr.mxu0 0.0
    %841 = vmatpush1.xpose.msra.mxu0 %v806
    %842 = vmatprep.subr.mxu0 0.0
    %843 = vmatpush2.xpose.msra.mxu0 0.0
    %844 = vmatprep.subr.mxu0 0.0
    %845 = vmatpush2.xpose.msra.mxu0 0.0
    %846 = vmatprep.subr.mxu0 0.0
    %847 = vmatpush2.xpose.msra.mxu0 0.0
    %848 = vmatprep.subr.mxu0 0.0
    %849 = vmatpush2.xpose.msra.mxu0 0.0
    %850 = vmatprep.subr.mxu0 0.0
    %851 = vmatpush2.xpose.msra.mxu0 0.0
    %852 = vmatprep.subr.mxu0 0.0
    %853 = vmatpush2.xpose.msra.mxu0 0.0
    %854 = vmatprep.subr.mxu0 0.0
    %855 = vmatpush2.xpose.msra.mxu0 0.0
    %856 = vmatprep.subr.mxu0 0.0
    %857 = vmatpush2.xpose.msra.mxu0 0.0
    %858 = vmatprep.subr.mxu0 0.0
    %859 = vmatpush2.xpose.msra.mxu0 0.0
    %860 = vmatprep.subr.mxu0 0.0
    %861 = vmatpush2.xpose.msra.mxu0 0.0
    %862 = vmatprep.subr.mxu0 0.0
    %863 = vmatpush2.xpose.msra.mxu0 0.0
    %864 = vmatprep.subr.mxu0 0.0
    %865 = vmatpush2.xpose.msra.mxu0 0.0
    %866 = vmatprep.subr.mxu0 0.0
    %867 = vmatpush2.xpose.msra.mxu0 0.0
    %868 = vmatprep.subr.mxu0 0.0
    %869 = vmatpush2.xpose.msra.mxu0 0.0
    %870 = vmatprep.subr.mxu0 0.0
    %871 = vmatpush2.xpose.msra.mxu0 0.0
    %872 = vmatprep.subr.mxu0 0.0
    %873 = vmatpush2.xpose.msra.mxu0 0.0
    %874 = vmatprep.mubr.f32.mxu0 0.0
    %875 = vmatmul.mubr.f32.gmra.mxu0 %v802
    %v876 = vpop.f32.mrf.mxu0
    %v877 = vadd.f32 0.0, %v876
    %v878 = vpop.f32.mrf.mxu0
    %879 = vmatprep.mubr.f32.mxu0 0.0
    %880 = vmatmul.mubr.f32.gmra.mxu0 %v804
    %v881 = vpop.f32.mrf.mxu0
    %v882 = vadd.f32 0.0, %v881
    %v883 = vpop.f32.mrf.mxu0
    %884 = vdwg.mxu0
    %885 = vrot.lane.b32.xlu0 %v272, 96
    %v886 = vpop.permute.xlu0 %885
    %887 = vrot.lane.b32.xlu0 %v274, 96
    %v888 = vpop.permute.xlu0 %887
    %v889 = vsel %vm279, %v272, 0
    %v891 = vsel %vm279, %v274, 0
    %v893 = vsel %vm279, %v886, 0
    %v895 = vsel %vm279, %v888, 0
    %897 = vmatprep.subr.mxu0 0.0
    %898 = vmatpush1.xpose.msra.mxu0 0.0
    %899 = vmatprep.subr.mxu0 0.0
    %900 = vmatpush1.xpose.msra.mxu0 0.0
    %901 = vmatprep.subr.mxu0 0.0
    %902 = vmatpush1.xpose.msra.mxu0 0.0
    %903 = vmatprep.subr.mxu0 0.0
    %904 = vmatpush1.xpose.msra.mxu0 0.0
    %905 = vmatprep.subr.mxu0 0.0
    %906 = vmatpush1.xpose.msra.mxu0 0.0
    %907 = vmatprep.subr.mxu0 0.0
    %908 = vmatpush1.xpose.msra.mxu0 0.0
    %909 = vmatprep.subr.mxu0 0.0
    %910 = vmatpush1.xpose.msra.mxu0 0.0
    %911 = vmatprep.subr.mxu0 0.0
    %912 = vmatpush1.xpose.msra.mxu0 0.0
    %913 = vmatprep.subr.mxu0 0.0
    %914 = vmatpush1.xpose.msra.mxu0 0.0
    %915 = vmatprep.subr.mxu0 0.0
    %916 = vmatpush1.xpose.msra.mxu0 0.0
    %917 = vmatprep.subr.mxu0 0.0
    %918 = vmatpush1.xpose.msra.mxu0 0.0
    %919 = vmatprep.subr.mxu0 0.0
    %920 = vmatpush1.xpose.msra.mxu0 0.0
    %921 = vmatprep.subr.mxu0 0.0
    %922 = vmatpush1.xpose.msra.mxu0 0.0
    %923 = vmatprep.subr.mxu0 0.0
    %924 = vmatpush1.xpose.msra.mxu0 0.0
    %925 = vmatprep.subr.mxu0 0.0
    %926 = vmatpush1.xpose.msra.mxu0 %v895
    %927 = vmatprep.subr.mxu0 0.0
    %928 = vmatpush1.xpose.msra.mxu0 %v893
    %929 = vmatprep.subr.mxu0 0.0
    %930 = vmatpush2.xpose.msra.mxu0 0.0
    %931 = vmatprep.subr.mxu0 0.0
    %932 = vmatpush2.xpose.msra.mxu0 0.0
    %933 = vmatprep.subr.mxu0 0.0
    %934 = vmatpush2.xpose.msra.mxu0 0.0
    %935 = vmatprep.subr.mxu0 0.0
    %936 = vmatpush2.xpose.msra.mxu0 0.0
    %937 = vmatprep.subr.mxu0 0.0
    %938 = vmatpush2.xpose.msra.mxu0 0.0
    %939 = vmatprep.subr.mxu0 0.0
    %940 = vmatpush2.xpose.msra.mxu0 0.0
    %941 = vmatprep.subr.mxu0 0.0
    %942 = vmatpush2.xpose.msra.mxu0 0.0
    %943 = vmatprep.subr.mxu0 0.0
    %944 = vmatpush2.xpose.msra.mxu0 0.0
    %945 = vmatprep.subr.mxu0 0.0
    %946 = vmatpush2.xpose.msra.mxu0 0.0
    %947 = vmatprep.subr.mxu0 0.0
    %948 = vmatpush2.xpose.msra.mxu0 0.0
    %949 = vmatprep.subr.mxu0 0.0
    %950 = vmatpush2.xpose.msra.mxu0 0.0
    %951 = vmatprep.subr.mxu0 0.0
    %952 = vmatpush2.xpose.msra.mxu0 0.0
    %953 = vmatprep.subr.mxu0 0.0
    %954 = vmatpush2.xpose.msra.mxu0 0.0
    %955 = vmatprep.subr.mxu0 0.0
    %956 = vmatpush2.xpose.msra.mxu0 0.0
    %957 = vmatprep.subr.mxu0 0.0
    %958 = vmatpush2.xpose.msra.mxu0 0.0
    %959 = vmatprep.subr.mxu0 0.0
    %960 = vmatpush2.xpose.msra.mxu0 0.0
    %961 = vmatprep.mubr.f32.mxu0 0.0
    %962 = vmatmul.mubr.f32.gmra.mxu0 %v889
    %v963 = vpop.f32.mrf.mxu0
    %v964 = vadd.f32 0.0, %v963
    %v965 = vpop.f32.mrf.mxu0
    %966 = vmatprep.mubr.f32.mxu0 0.0
    %967 = vmatmul.mubr.f32.gmra.mxu0 %v891
    %v968 = vpop.f32.mrf.mxu0
    %v969 = vadd.f32 0.0, %v968
    %v970 = vpop.f32.mrf.mxu0
    %971 = vdwg.mxu0
    %vm972 = vcmask 130048
    %v973 = vsel %vm972, %v355, -inf
    %974 = vmax.xlane.f32.xlu0 %v973
    %v975 = vpop.xlane.xlu0 %974
    %v976 = vsel %vm972, %v360, -inf
    %977 = vmax.xlane.f32.xlu0 %v976
    %v978 = vpop.xlane.xlu0 %977
    %v979 = vsel %vm972, %v442, -inf
    %980 = vmax.xlane.f32.xlu0 %v979
    %v981 = vpop.xlane.xlu0 %980
    %v982 = vsel %vm972, %v447, -inf
    %983 = vmax.xlane.f32.xlu0 %v982
    %v984 = vpop.xlane.xlu0 %983
    %v985 = vsel %vm972, %v529, -inf
    %986 = vmax.xlane.f32.xlu0 %v985
    %v987 = vpop.xlane.xlu0 %986
    %v988 = vsel %vm972, %v534, -inf
    %989 = vmax.xlane.f32.xlu0 %v988
    %v990 = vpop.xlane.xlu0 %989
    %v991 = vsel %vm972, %v616, -inf
    %992 = vmax.xlane.f32.xlu0 %v991
    %v993 = vpop.xlane.xlu0 %992
    %v994 = vsel %vm972, %v621, -inf
    %995 = vmax.xlane.f32.xlu0 %v994
    %v996 = vpop.xlane.xlu0 %995
    %v997 = vsel %vm972, %v703, -inf
    %998 = vmax.xlane.f32.xlu0 %v997
    %v999 = vpop.xlane.xlu0 %998
    %v1000 = vsel %vm972, %v708, -inf
    %1001 = vmax.xlane.f32.xlu0 %v1000
    %v1002 = vpop.xlane.xlu0 %1001
    %v1003 = vsel %vm972, %v790, -inf
    %1004 = vmax.xlane.f32.xlu0 %v1003
    %v1005 = vpop.xlane.xlu0 %1004
    %v1006 = vsel %vm972, %v795, -inf
    %1007 = vmax.xlane.f32.xlu0 %v1006
    %v1008 = vpop.xlane.xlu0 %1007
    %v1009 = vsel %vm972, %v877, -inf
    %1010 = vmax.xlane.f32.xlu0 %v1009
    %v1011 = vpop.xlane.xlu0 %1010
    %v1012 = vsel %vm972, %v882, -inf
    %1013 = vmax.xlane.f32.xlu0 %v1012
    %v1014 = vpop.xlane.xlu0 %1013
    %v1015 = vsel %vm972, %v964, -inf
    %1016 = vmax.xlane.f32.xlu0 %v1015
    %v1017 = vpop.xlane.xlu0 %1016
    %v1018 = vsel %vm972, %v969, -inf
    %1019 = vmax.xlane.f32.xlu0 %v1018
    %v1020 = vpop.xlane.xlu0 %1019
    %v1021 = vsub.f32 %v355, %v975
    %v1022 = vsub.f32 %v360, %v978
    %v1023 = vsub.f32 %v442, %v981
    %v1024 = vsub.f32 %v447, %v984
    %v1025 = vsub.f32 %v529, %v987
    %v1026 = vsub.f32 %v534, %v990
    %v1027 = vsub.f32 %v616, %v993
    %v1028 = vsub.f32 %v621, %v996
    %v1029 = vsub.f32 %v703, %v999
    %v1030 = vsub.f32 %v708, %v1002
    %v1031 = vsub.f32 %v790, %v1005
    %v1032 = vsub.f32 %v795, %v1008
    %v1033 = vsub.f32 %v877, %v1011
    %v1034 = vsub.f32 %v882, %v1014
    %v1035 = vsub.f32 %v964, %v1017
    %v1036 = vsub.f32 %v969, %v1020
    %v1037 = vmul.f32 %v1021, 1.442695
    %v1038 = vpow.pop %v1037
    %v1039 = vmul.f32 %v1022, 1.442695
    %v1040 = vpow.pop %v1039
    %v1041 = vmul.f32 %v1023, 1.442695
    %v1042 = vpow.pop %v1041
    %v1043 = vmul.f32 %v1024, 1.442695
    %v1044 = vpow.pop %v1043
    %v1045 = vmul.f32 %v1025, 1.442695
    %v1046 = vpow.pop %v1045
    %v1047 = vmul.f32 %v1026, 1.442695
    %v1048 = vpow.pop %v1047
    %v1049 = vmul.f32 %v1027, 1.442695
    %v1050 = vpow.pop %v1049
    %v1051 = vmul.f32 %v1028, 1.442695
    %v1052 = vpow.pop %v1051
    %v1053 = vmul.f32 %v1029, 1.442695
    %v1054 = vpow.pop %v1053
    %v1055 = vmul.f32 %v1030, 1.442695
    %v1056 = vpow.pop %v1055
    %v1057 = vmul.f32 %v1031, 1.442695
    %v1058 = vpow.pop %v1057
    %v1059 = vmul.f32 %v1032, 1.442695
    %v1060 = vpow.pop %v1059
    %v1061 = vmul.f32 %v1033, 1.442695
    %v1062 = vpow.pop %v1061
    %v1063 = vmul.f32 %v1034, 1.442695
    %v1064 = vpow.pop %v1063
    %v1065 = vmul.f32 %v1035, 1.442695
    %v1066 = vpow.pop %v1065
    %v1067 = vmul.f32 %v1036, 1.442695
    %v1068 = vpow.pop %v1067
    %v1069 = vsel %vm972, %v1038, 0.0
    %1070 = vadd.xlane.f32.xlu0 %v1069
    %v1071 = vpop.xlane.xlu0 %1070
    %v1072 = vsel %vm972, %v1040, 0.0
    %1073 = vadd.xlane.f32.xlu0 %v1072
    %v1074 = vpop.xlane.xlu0 %1073
    %v1075 = vsel %vm972, %v1042, 0.0
    %1076 = vadd.xlane.f32.xlu0 %v1075
    %v1077 = vpop.xlane.xlu0 %1076
    %v1078 = vsel %vm972, %v1044, 0.0
    %1079 = vadd.xlane.f32.xlu0 %v1078
    %v1080 = vpop.xlane.xlu0 %1079
    %v1081 = vsel %vm972, %v1046, 0.0
    %1082 = vadd.xlane.f32.xlu0 %v1081
    %v1083 = vpop.xlane.xlu0 %1082
    %v1084 = vsel %vm972, %v1048, 0.0
    %1085 = vadd.xlane.f32.xlu0 %v1084
    %v1086 = vpop.xlane.xlu0 %1085
    %v1087 = vsel %vm972, %v1050, 0.0
    %1088 = vadd.xlane.f32.xlu0 %v1087
    %v1089 = vpop.xlane.xlu0 %1088
    %v1090 = vsel %vm972, %v1052, 0.0
    %1091 = vadd.xlane.f32.xlu0 %v1090
    %v1092 = vpop.xlane.xlu0 %1091
    %v1093 = vsel %vm972, %v1054, 0.0
    %1094 = vadd.xlane.f32.xlu0 %v1093
    %v1095 = vpop.xlane.xlu0 %1094
    %v1096 = vsel %vm972, %v1056, 0.0
    %1097 = vadd.xlane.f32.xlu0 %v1096
    %v1098 = vpop.xlane.xlu0 %1097
    %v1099 = vsel %vm972, %v1058, 0.0
    %1100 = vadd.xlane.f32.xlu0 %v1099
    %v1101 = vpop.xlane.xlu0 %1100
    %v1102 = vsel %vm972, %v1060, 0.0
    %1103 = vadd.xlane.f32.xlu0 %v1102
    %v1104 = vpop.xlane.xlu0 %1103
    %v1105 = vsel %vm972, %v1062, 0.0
    %1106 = vadd.xlane.f32.xlu0 %v1105
    %v1107 = vpop.xlane.xlu0 %1106
    %v1108 = vsel %vm972, %v1064, 0.0
    %1109 = vadd.xlane.f32.xlu0 %v1108
    %v1110 = vpop.xlane.xlu0 %1109
    %v1111 = vsel %vm972, %v1066, 0.0
    %1112 = vadd.xlane.f32.xlu0 %v1111
    %v1113 = vpop.xlane.xlu0 %1112
    %v1114 = vsel %vm972, %v1068, 0.0
    %1115 = vadd.xlane.f32.xlu0 %v1114
    %v1116 = vpop.xlane.xlu0 %1115
    %v1117 = vrcp.pop %v1071
    %v1118 = vrcp.pop %v1074
    %v1119 = vrcp.pop %v1077
    %v1120 = vrcp.pop %v1080
    %v1121 = vrcp.pop %v1083
    %v1122 = vrcp.pop %v1086
    %v1123 = vrcp.pop %v1089
    %v1124 = vrcp.pop %v1092
    %v1125 = vrcp.pop %v1095
    %v1126 = vrcp.pop %v1098
    %v1127 = vrcp.pop %v1101
    %v1128 = vrcp.pop %v1104
    %v1129 = vrcp.pop %v1107
    %v1130 = vrcp.pop %v1110
    %v1131 = vrcp.pop %v1113
    %v1132 = vrcp.pop %v1116
    %v1133 = vmul.f32 %v1038, %v1117
    %v1134 = vmul.f32 %v1040, %v1118
    %v1135 = vmul.f32 %v1042, %v1119
    %v1136 = vmul.f32 %v1044, %v1120
    %v1137 = vmul.f32 %v1046, %v1121
    %v1138 = vmul.f32 %v1048, %v1122
    %v1139 = vmul.f32 %v1050, %v1123
    %v1140 = vmul.f32 %v1052, %v1124
    %v1141 = vmul.f32 %v1054, %v1125
    %v1142 = vmul.f32 %v1056, %v1126
    %v1143 = vmul.f32 %v1058, %v1127
    %v1144 = vmul.f32 %v1060, %v1128
    %v1145 = vmul.f32 %v1062, %v1129
    %v1146 = vmul.f32 %v1064, %v1130
    %v1147 = vmul.f32 %v1066, %v1131
    %v1148 = vmul.f32 %v1068, %v1132
    %1149 = vrot.lane.b32.xlu0 %v229, 64
    %v1150 = vpop.permute.xlu0 %1149
    %1151 = vrot.lane.b32.xlu0 %v234, 64
    %v1152 = vpop.permute.xlu0 %1151
    %v1156 = vsel %vm972, %v1133, 0
    %v1159 = vsel %vm972, %v1134, 0
    %1161 = vmatprep.subr.mxu0 0.0
    %1162 = vmatpush1.msra.mxu0 0.0
    %1163 = vmatprep.subr.mxu0 0.0
    %1164 = vmatpush1.msra.mxu0 0.0
    %1165 = vmatprep.subr.mxu0 0.0
    %1166 = vmatpush1.msra.mxu0 0.0
    %1167 = vmatprep.subr.mxu0 0.0
    %1168 = vmatpush1.msra.mxu0 0.0
    %1169 = vmatprep.subr.mxu0 0.0
    %1170 = vmatpush1.msra.mxu0 0.0
    %1171 = vmatprep.subr.mxu0 0.0
    %1172 = vmatpush1.msra.mxu0 0.0
    %1173 = vmatprep.subr.mxu0 0.0
    %1174 = vmatpush1.msra.mxu0 0.0
    %1175 = vmatprep.subr.mxu0 0.0
    %1176 = vmatpush1.msra.mxu0 0.0
    %1177 = vmatprep.subr.mxu0 0.0
    %1178 = vmatpush1.msra.mxu0 0.0
    %1179 = vmatprep.subr.mxu0 0.0
    %1180 = vmatpush1.msra.mxu0 0.0
    %1181 = vmatprep.subr.mxu0 0.0
    %1182 = vmatpush1.msra.mxu0 0.0
    %1183 = vmatprep.subr.mxu0 0.0
    %1184 = vmatpush1.msra.mxu0 0.0
    %1185 = vmatprep.subr.mxu0 0.0
    %1186 = vmatpush1.msra.mxu0 0.0
    %1187 = vmatprep.subr.mxu0 0.0
    %1188 = vmatpush1.msra.mxu0 0.0
    %1189 = vmatprep.subr.mxu0 0.0
    %1190 = vmatpush1.msra.mxu0 %v1152
    %1191 = vmatprep.subr.mxu0 0.0
    %1192 = vmatpush1.msra.mxu0 %v1150
    %1193 = vmatprep.subr.mxu0 0.0
    %1194 = vmatpush2.msra.mxu0 0.0
    %1195 = vmatprep.subr.mxu0 0.0
    %1196 = vmatpush2.msra.mxu0 0.0
    %1197 = vmatprep.subr.mxu0 0.0
    %1198 = vmatpush2.msra.mxu0 0.0
    %1199 = vmatprep.subr.mxu0 0.0
    %1200 = vmatpush2.msra.mxu0 0.0
    %1201 = vmatprep.subr.mxu0 0.0
    %1202 = vmatpush2.msra.mxu0 0.0
    %1203 = vmatprep.subr.mxu0 0.0
    %1204 = vmatpush2.msra.mxu0 0.0
    %1205 = vmatprep.subr.mxu0 0.0
    %1206 = vmatpush2.msra.mxu0 0.0
    %1207 = vmatprep.subr.mxu0 0.0
    %1208 = vmatpush2.msra.mxu0 0.0
    %1209 = vmatprep.subr.mxu0 0.0
    %1210 = vmatpush2.msra.mxu0 0.0
    %1211 = vmatprep.subr.mxu0 0.0
    %1212 = vmatpush2.msra.mxu0 0.0
    %1213 = vmatprep.subr.mxu0 0.0
    %1214 = vmatpush2.msra.mxu0 0.0
    %1215 = vmatprep.subr.mxu0 0.0
    %1216 = vmatpush2.msra.mxu0 0.0
    %1217 = vmatprep.subr.mxu0 0.0
    %1218 = vmatpush2.msra.mxu0 0.0
    %1219 = vmatprep.subr.mxu0 0.0
    %1220 = vmatpush2.msra.mxu0 0.0
    %1221 = vmatprep.subr.mxu0 0.0
    %1222 = vmatpush2.msra.mxu0 0.0
    %1223 = vmatprep.subr.mxu0 0.0
    %1224 = vmatpush2.msra.mxu0 0.0
    %1225 = vmatprep.mubr.f32.mxu0 0.0
    %1226 = vmatmul.mubr.f32.gmra.mxu0 %v1156
    %v1227 = vpop.f32.mrf.mxu0
    %v1228 = vadd.f32 0.0, %v1227
    %v1229 = vpop.f32.mrf.mxu0
    %1230 = vmatprep.mubr.f32.mxu0 0.0
    %1231 = vmatmul.mubr.f32.gmra.mxu0 %v1159
    %v1232 = vpop.f32.mrf.mxu0
    %v1233 = vadd.f32 0.0, %v1232
    %v1234 = vpop.f32.mrf.mxu0
    %1235 = vdwg.mxu0
    %1236 = vrot.lane.b32.xlu0 %v250, 64
    %v1237 = vpop.permute.xlu0 %1236
    %1238 = vrot.lane.b32.xlu0 %v252, 64
    %v1239 = vpop.permute.xlu0 %1238
    %v1243 = vsel %vm972, %v1135, 0
    %v1246 = vsel %vm972, %v1136, 0
    %1248 = vmatprep.subr.mxu0 0.0
    %1249 = vmatpush1.msra.mxu0 0.0
    %1250 = vmatprep.subr.mxu0 0.0
    %1251 = vmatpush1.msra.mxu0 0.0
    %1252 = vmatprep.subr.mxu0 0.0
    %1253 = vmatpush1.msra.mxu0 0.0
    %1254 = vmatprep.subr.mxu0 0.0
    %1255 = vmatpush1.msra.mxu0 0.0
    %1256 = vmatprep.subr.mxu0 0.0
    %1257 = vmatpush1.msra.mxu0 0.0
    %1258 = vmatprep.subr.mxu0 0.0
    %1259 = vmatpush1.msra.mxu0 0.0
    %1260 = vmatprep.subr.mxu0 0.0
    %1261 = vmatpush1.msra.mxu0 0.0
    %1262 = vmatprep.subr.mxu0 0.0
    %1263 = vmatpush1.msra.mxu0 0.0
    %1264 = vmatprep.subr.mxu0 0.0
    %1265 = vmatpush1.msra.mxu0 0.0
    %1266 = vmatprep.subr.mxu0 0.0
    %1267 = vmatpush1.msra.mxu0 0.0
    %1268 = vmatprep.subr.mxu0 0.0
    %1269 = vmatpush1.msra.mxu0 0.0
    %1270 = vmatprep.subr.mxu0 0.0
    %1271 = vmatpush1.msra.mxu0 0.0
    %1272 = vmatprep.subr.mxu0 0.0
    %1273 = vmatpush1.msra.mxu0 0.0
    %1274 = vmatprep.subr.mxu0 0.0
    %1275 = vmatpush1.msra.mxu0 0.0
    %1276 = vmatprep.subr.mxu0 0.0
    %1277 = vmatpush1.msra.mxu0 %v1239
    %1278 = vmatprep.subr.mxu0 0.0
    %1279 = vmatpush1.msra.mxu0 %v1237
    %1280 = vmatprep.subr.mxu0 0.0
    %1281 = vmatpush2.msra.mxu0 0.0
    %1282 = vmatprep.subr.mxu0 0.0
    %1283 = vmatpush2.msra.mxu0 0.0
    %1284 = vmatprep.subr.mxu0 0.0
    %1285 = vmatpush2.msra.mxu0 0.0
    %1286 = vmatprep.subr.mxu0 0.0
    %1287 = vmatpush2.msra.mxu0 0.0
    %1288 = vmatprep.subr.mxu0 0.0
    %1289 = vmatpush2.msra.mxu0 0.0
    %1290 = vmatprep.subr.mxu0 0.0
    %1291 = vmatpush2.msra.mxu0 0.0
    %1292 = vmatprep.subr.mxu0 0.0
    %1293 = vmatpush2.msra.mxu0 0.0
    %1294 = vmatprep.subr.mxu0 0.0
    %1295 = vmatpush2.msra.mxu0 0.0
    %1296 = vmatprep.subr.mxu0 0.0
    %1297 = vmatpush2.msra.mxu0 0.0
    %1298 = vmatprep.subr.mxu0 0.0
    %1299 = vmatpush2.msra.mxu0 0.0
    %1300 = vmatprep.subr.mxu0 0.0
    %1301 = vmatpush2.msra.mxu0 0.0
    %1302 = vmatprep.subr.mxu0 0.0
    %1303 = vmatpush2.msra.mxu0 0.0
    %1304 = vmatprep.subr.mxu0 0.0
    %1305 = vmatpush2.msra.mxu0 0.0
    %1306 = vmatprep.subr.mxu0 0.0
    %1307 = vmatpush2.msra.mxu0 0.0
    %1308 = vmatprep.subr.mxu0 0.0
    %1309 = vmatpush2.msra.mxu0 0.0
    %1310 = vmatprep.subr.mxu0 0.0
    %1311 = vmatpush2.msra.mxu0 0.0
    %1312 = vmatprep.mubr.f32.mxu0 0.0
    %1313 = vmatmul.mubr.f32.gmra.mxu0 %v1243
    %v1314 = vpop.f32.mrf.mxu0
    %v1315 = vadd.f32 0.0, %v1314
    %v1316 = vpop.f32.mrf.mxu0
    %1317 = vmatprep.mubr.f32.mxu0 0.0
    %1318 = vmatmul.mubr.f32.gmra.mxu0 %v1246
    %v1319 = vpop.f32.mrf.mxu0
    %v1320 = vadd.f32 0.0, %v1319
    %v1321 = vpop.f32.mrf.mxu0
    %1322 = vdwg.mxu0
    %1323 = vrot.lane.b32.xlu0 %v254, 64
    %v1324 = vpop.permute.xlu0 %1323
    %1325 = vrot.lane.b32.xlu0 %v256, 64
    %v1326 = vpop.permute.xlu0 %1325
    %v1330 = vsel %vm972, %v1137, 0
    %v1333 = vsel %vm972, %v1138, 0
    %1335 = vmatprep.subr.mxu0 0.0
    %1336 = vmatpush1.msra.mxu0 0.0
    %1337 = vmatprep.subr.mxu0 0.0
    %1338 = vmatpush1.msra.mxu0 0.0
    %1339 = vmatprep.subr.mxu0 0.0
    %1340 = vmatpush1.msra.mxu0 0.0
    %1341 = vmatprep.subr.mxu0 0.0
    %1342 = vmatpush1.msra.mxu0 0.0
    %1343 = vmatprep.subr.mxu0 0.0
    %1344 = vmatpush1.msra.mxu0 0.0
    %1345 = vmatprep.subr.mxu0 0.0
    %1346 = vmatpush1.msra.mxu0 0.0
    %1347 = vmatprep.subr.mxu0 0.0
    %1348 = vmatpush1.msra.mxu0 0.0
    %1349 = vmatprep.subr.mxu0 0.0
    %1350 = vmatpush1.msra.mxu0 0.0
    %1351 = vmatprep.subr.mxu0 0.0
    %1352 = vmatpush1.msra.mxu0 0.0
    %1353 = vmatprep.subr.mxu0 0.0
    %1354 = vmatpush1.msra.mxu0 0.0
    %1355 = vmatprep.subr.mxu0 0.0
    %1356 = vmatpush1.msra.mxu0 0.0
    %1357 = vmatprep.subr.mxu0 0.0
    %1358 = vmatpush1.msra.mxu0 0.0
    %1359 = vmatprep.subr.mxu0 0.0
    %1360 = vmatpush1.msra.mxu0 0.0
    %1361 = vmatprep.subr.mxu0 0.0
    %1362 = vmatpush1.msra.mxu0 0.0
    %1363 = vmatprep.subr.mxu0 0.0
    %1364 = vmatpush1.msra.mxu0 %v1326
    %1365 = vmatprep.subr.mxu0 0.0
    %1366 = vmatpush1.msra.mxu0 %v1324
    %1367 = vmatprep.subr.mxu0 0.0
    %1368 = vmatpush2.msra.mxu0 0.0
    %1369 = vmatprep.subr.mxu0 0.0
    %1370 = vmatpush2.msra.mxu0 0.0
    %1371 = vmatprep.subr.mxu0 0.0
    %1372 = vmatpush2.msra.mxu0 0.0
    %1373 = vmatprep.subr.mxu0 0.0
    %1374 = vmatpush2.msra.mxu0 0.0
    %1375 = vmatprep.subr.mxu0 0.0
    %1376 = vmatpush2.msra.mxu0 0.0
    %1377 = vmatprep.subr.mxu0 0.0
    %1378 = vmatpush2.msra.mxu0 0.0
    %1379 = vmatprep.subr.mxu0 0.0
    %1380 = vmatpush2.msra.mxu0 0.0
    %1381 = vmatprep.subr.mxu0 0.0
    %1382 = vmatpush2.msra.mxu0 0.0
    %1383 = vmatprep.subr.mxu0 0.0
    %1384 = vmatpush2.msra.mxu0 0.0
    %1385 = vmatprep.subr.mxu0 0.0
    %1386 = vmatpush2.msra.mxu0 0.0
    %1387 = vmatprep.subr.mxu0 0.0
    %1388 = vmatpush2.msra.mxu0 0.0
    %1389 = vmatprep.subr.mxu0 0.0
    %1390 = vmatpush2.msra.mxu0 0.0
    %1391 = vmatprep.subr.mxu0 0.0
    %1392 = vmatpush2.msra.mxu0 0.0
    %1393 = vmatprep.subr.mxu0 0.0
    %1394 = vmatpush2.msra.mxu0 0.0
    %1395 = vmatprep.subr.mxu0 0.0
    %1396 = vmatpush2.msra.mxu0 0.0
    %1397 = vmatprep.subr.mxu0 0.0
    %1398 = vmatpush2.msra.mxu0 0.0
    %1399 = vmatprep.mubr.f32.mxu0 0.0
    %1400 = vmatmul.mubr.f32.gmra.mxu0 %v1330
    %v1401 = vpop.f32.mrf.mxu0
    %v1402 = vadd.f32 0.0, %v1401
    %v1403 = vpop.f32.mrf.mxu0
    %1404 = vmatprep.mubr.f32.mxu0 0.0
    %1405 = vmatmul.mubr.f32.gmra.mxu0 %v1333
    %v1406 = vpop.f32.mrf.mxu0
    %v1407 = vadd.f32 0.0, %v1406
    %v1408 = vpop.f32.mrf.mxu0
    %1409 = vdwg.mxu0
    %1410 = vrot.lane.b32.xlu0 %v258, 64
    %v1411 = vpop.permute.xlu0 %1410
    %1412 = vrot.lane.b32.xlu0 %v260, 64
    %v1413 = vpop.permute.xlu0 %1412
    %v1417 = vsel %vm972, %v1139, 0
    %v1420 = vsel %vm972, %v1140, 0
    %1422 = vmatprep.subr.mxu0 0.0
    %1423 = vmatpush1.msra.mxu0 0.0
    %1424 = vmatprep.subr.mxu0 0.0
    %1425 = vmatpush1.msra.mxu0 0.0
    %1426 = vmatprep.subr.mxu0 0.0
    %1427 = vmatpush1.msra.mxu0 0.0
    %1428 = vmatprep.subr.mxu0 0.0
    %1429 = vmatpush1.msra.mxu0 0.0
    %1430 = vmatprep.subr.mxu0 0.0
    %1431 = vmatpush1.msra.mxu0 0.0
    %1432 = vmatprep.subr.mxu0 0.0
    %1433 = vmatpush1.msra.mxu0 0.0
    %1434 = vmatprep.subr.mxu0 0.0
    %1435 = vmatpush1.msra.mxu0 0.0
    %1436 = vmatprep.subr.mxu0 0.0
    %1437 = vmatpush1.msra.mxu0 0.0
    %1438 = vmatprep.subr.mxu0 0.0
    %1439 = vmatpush1.msra.mxu0 0.0
    %1440 = vmatprep.subr.mxu0 0.0
    %1441 = vmatpush1.msra.mxu0 0.0
    %1442 = vmatprep.subr.mxu0 0.0
    %1443 = vmatpush1.msra.mxu0 0.0
    %1444 = vmatprep.subr.mxu0 0.0
    %1445 = vmatpush1.msra.mxu0 0.0
    %1446 = vmatprep.subr.mxu0 0.0
    %1447 = vmatpush1.msra.mxu0 0.0
    %1448 = vmatprep.subr.mxu0 0.0
    %1449 = vmatpush1.msra.mxu0 0.0
    %1450 = vmatprep.subr.mxu0 0.0
    %1451 = vmatpush1.msra.mxu0 %v1413
    %1452 = vmatprep.subr.mxu0 0.0
    %1453 = vmatpush1.msra.mxu0 %v1411
    %1454 = vmatprep.subr.mxu0 0.0
    %1455 = vmatpush2.msra.mxu0 0.0
    %1456 = vmatprep.subr.mxu0 0.0
    %1457 = vmatpush2.msra.mxu0 0.0
    %1458 = vmatprep.subr.mxu0 0.0
    %1459 = vmatpush2.msra.mxu0 0.0
    %1460 = vmatprep.subr.mxu0 0.0
    %1461 = vmatpush2.msra.mxu0 0.0
    %1462 = vmatprep.subr.mxu0 0.0
    %1463 = vmatpush2.msra.mxu0 0.0
    %1464 = vmatprep.subr.mxu0 0.0
    %1465 = vmatpush2.msra.mxu0 0.0
    %1466 = vmatprep.subr.mxu0 0.0
    %1467 = vmatpush2.msra.mxu0 0.0
    %1468 = vmatprep.subr.mxu0 0.0
    %1469 = vmatpush2.msra.mxu0 0.0
    %1470 = vmatprep.subr.mxu0 0.0
    %1471 = vmatpush2.msra.mxu0 0.0
    %1472 = vmatprep.subr.mxu0 0.0
    %1473 = vmatpush2.msra.mxu0 0.0
    %1474 = vmatprep.subr.mxu0 0.0
    %1475 = vmatpush2.msra.mxu0 0.0
    %1476 = vmatprep.subr.mxu0 0.0
    %1477 = vmatpush2.msra.mxu0 0.0
    %1478 = vmatprep.subr.mxu0 0.0
    %1479 = vmatpush2.msra.mxu0 0.0
    %1480 = vmatprep.subr.mxu0 0.0
    %1481 = vmatpush2.msra.mxu0 0.0
    %1482 = vmatprep.subr.mxu0 0.0
    %1483 = vmatpush2.msra.mxu0 0.0
    %1484 = vmatprep.subr.mxu0 0.0
    %1485 = vmatpush2.msra.mxu0 0.0
    %1486 = vmatprep.mubr.f32.mxu0 0.0
    %1487 = vmatmul.mubr.f32.gmra.mxu0 %v1417
    %v1488 = vpop.f32.mrf.mxu0
    %v1489 = vadd.f32 0.0, %v1488
    %v1490 = vpop.f32.mrf.mxu0
    %1491 = vmatprep.mubr.f32.mxu0 0.0
    %1492 = vmatmul.mubr.f32.gmra.mxu0 %v1420
    %v1493 = vpop.f32.mrf.mxu0
    %v1494 = vadd.f32 0.0, %v1493
    %v1495 = vpop.f32.mrf.mxu0
    %1496 = vdwg.mxu0
    %1497 = vrot.lane.b32.xlu0 %v239, 64
    %v1498 = vpop.permute.xlu0 %1497
    %1499 = vrot.lane.b32.xlu0 %v244, 64
    %v1500 = vpop.permute.xlu0 %1499
    %v1504 = vsel %vm972, %v1141, 0
    %v1507 = vsel %vm972, %v1142, 0
    %1509 = vmatprep.subr.mxu0 0.0
    %1510 = vmatpush1.msra.mxu0 0.0
    %1511 = vmatprep.subr.mxu0 0.0
    %1512 = vmatpush1.msra.mxu0 0.0
    %1513 = vmatprep.subr.mxu0 0.0
    %1514 = vmatpush1.msra.mxu0 0.0
    %1515 = vmatprep.subr.mxu0 0.0
    %1516 = vmatpush1.msra.mxu0 0.0
    %1517 = vmatprep.subr.mxu0 0.0
    %1518 = vmatpush1.msra.mxu0 0.0
    %1519 = vmatprep.subr.mxu0 0.0
    %1520 = vmatpush1.msra.mxu0 0.0
    %1521 = vmatprep.subr.mxu0 0.0
    %1522 = vmatpush1.msra.mxu0 0.0
    %1523 = vmatprep.subr.mxu0 0.0
    %1524 = vmatpush1.msra.mxu0 0.0
    %1525 = vmatprep.subr.mxu0 0.0
    %1526 = vmatpush1.msra.mxu0 0.0
    %1527 = vmatprep.subr.mxu0 0.0
    %1528 = vmatpush1.msra.mxu0 0.0
    %1529 = vmatprep.subr.mxu0 0.0
    %1530 = vmatpush1.msra.mxu0 0.0
    %1531 = vmatprep.subr.mxu0 0.0
    %1532 = vmatpush1.msra.mxu0 0.0
    %1533 = vmatprep.subr.mxu0 0.0
    %1534 = vmatpush1.msra.mxu0 0.0
    %1535 = vmatprep.subr.mxu0 0.0
    %1536 = vmatpush1.msra.mxu0 0.0
    %1537 = vmatprep.subr.mxu0 0.0
    %1538 = vmatpush1.msra.mxu0 %v1500
    %1539 = vmatprep.subr.mxu0 0.0
    %1540 = vmatpush1.msra.mxu0 %v1498
    %1541 = vmatprep.subr.mxu0 0.0
    %1542 = vmatpush2.msra.mxu0 0.0
    %1543 = vmatprep.subr.mxu0 0.0
    %1544 = vmatpush2.msra.mxu0 0.0
    %1545 = vmatprep.subr.mxu0 0.0
    %1546 = vmatpush2.msra.mxu0 0.0
    %1547 = vmatprep.subr.mxu0 0.0
    %1548 = vmatpush2.msra.mxu0 0.0
    %1549 = vmatprep.subr.mxu0 0.0
    %1550 = vmatpush2.msra.mxu0 0.0
    %1551 = vmatprep.subr.mxu0 0.0
    %1552 = vmatpush2.msra.mxu0 0.0
    %1553 = vmatprep.subr.mxu0 0.0
    %1554 = vmatpush2.msra.mxu0 0.0
    %1555 = vmatprep.subr.mxu0 0.0
    %1556 = vmatpush2.msra.mxu0 0.0
    %1557 = vmatprep.subr.mxu0 0.0
    %1558 = vmatpush2.msra.mxu0 0.0
    %1559 = vmatprep.subr.mxu0 0.0
    %1560 = vmatpush2.msra.mxu0 0.0
    %1561 = vmatprep.subr.mxu0 0.0
    %1562 = vmatpush2.msra.mxu0 0.0
    %1563 = vmatprep.subr.mxu0 0.0
    %1564 = vmatpush2.msra.mxu0 0.0
    %1565 = vmatprep.subr.mxu0 0.0
    %1566 = vmatpush2.msra.mxu0 0.0
    %1567 = vmatprep.subr.mxu0 0.0
    %1568 = vmatpush2.msra.mxu0 0.0
    %1569 = vmatprep.subr.mxu0 0.0
    %1570 = vmatpush2.msra.mxu0 0.0
    %1571 = vmatprep.subr.mxu0 0.0
    %1572 = vmatpush2.msra.mxu0 0.0
    %1573 = vmatprep.mubr.f32.mxu0 0.0
    %1574 = vmatmul.mubr.f32.gmra.mxu0 %v1504
    %v1575 = vpop.f32.mrf.mxu0
    %v1576 = vadd.f32 0.0, %v1575
    %v1577 = vpop.f32.mrf.mxu0
    %1578 = vmatprep.mubr.f32.mxu0 0.0
    %1579 = vmatmul.mubr.f32.gmra.mxu0 %v1507
    %v1580 = vpop.f32.mrf.mxu0
    %v1581 = vadd.f32 0.0, %v1580
    %v1582 = vpop.f32.mrf.mxu0
    %1583 = vdwg.mxu0
    %1584 = vrot.lane.b32.xlu0 %v264, 64
    %v1585 = vpop.permute.xlu0 %1584
    %1586 = vrot.lane.b32.xlu0 %v266, 64
    %v1587 = vpop.permute.xlu0 %1586
    %v1591 = vsel %vm972, %v1143, 0
    %v1594 = vsel %vm972, %v1144, 0
    %1596 = vmatprep.subr.mxu0 0.0
    %1597 = vmatpush1.msra.mxu0 0.0
    %1598 = vmatprep.subr.mxu0 0.0
    %1599 = vmatpush1.msra.mxu0 0.0
    %1600 = vmatprep.subr.mxu0 0.0
    %1601 = vmatpush1.msra.mxu0 0.0
    %1602 = vmatprep.subr.mxu0 0.0
    %1603 = vmatpush1.msra.mxu0 0.0
    %1604 = vmatprep.subr.mxu0 0.0
    %1605 = vmatpush1.msra.mxu0 0.0
    %1606 = vmatprep.subr.mxu0 0.0
    %1607 = vmatpush1.msra.mxu0 0.0
    %1608 = vmatprep.subr.mxu0 0.0
    %1609 = vmatpush1.msra.mxu0 0.0
    %1610 = vmatprep.subr.mxu0 0.0
    %1611 = vmatpush1.msra.mxu0 0.0
    %1612 = vmatprep.subr.mxu0 0.0
    %1613 = vmatpush1.msra.mxu0 0.0
    %1614 = vmatprep.subr.mxu0 0.0
    %1615 = vmatpush1.msra.mxu0 0.0
    %1616 = vmatprep.subr.mxu0 0.0
    %1617 = vmatpush1.msra.mxu0 0.0
    %1618 = vmatprep.subr.mxu0 0.0
    %1619 = vmatpush1.msra.mxu0 0.0
    %1620 = vmatprep.subr.mxu0 0.0
    %1621 = vmatpush1.msra.mxu0 0.0
    %1622 = vmatprep.subr.mxu0 0.0
    %1623 = vmatpush1.msra.mxu0 0.0
    %1624 = vmatprep.subr.mxu0 0.0
    %1625 = vmatpush1.msra.mxu0 %v1587
    %1626 = vmatprep.subr.mxu0 0.0
    %1627 = vmatpush1.msra.mxu0 %v1585
    %1628 = vmatprep.subr.mxu0 0.0
    %1629 = vmatpush2.msra.mxu0 0.0
    %1630 = vmatprep.subr.mxu0 0.0
    %1631 = vmatpush2.msra.mxu0 0.0
    %1632 = vmatprep.subr.mxu0 0.0
    %1633 = vmatpush2.msra.mxu0 0.0
    %1634 = vmatprep.subr.mxu0 0.0
    %1635 = vmatpush2.msra.mxu0 0.0
    %1636 = vmatprep.subr.mxu0 0.0
    %1637 = vmatpush2.msra.mxu0 0.0
    %1638 = vmatprep.subr.mxu0 0.0
    %1639 = vmatpush2.msra.mxu0 0.0
    %1640 = vmatprep.subr.mxu0 0.0
    %1641 = vmatpush2.msra.mxu0 0.0
    %1642 = vmatprep.subr.mxu0 0.0
    %1643 = vmatpush2.msra.mxu0 0.0
    %1644 = vmatprep.subr.mxu0 0.0
    %1645 = vmatpush2.msra.mxu0 0.0
    %1646 = vmatprep.subr.mxu0 0.0
    %1647 = vmatpush2.msra.mxu0 0.0
    %1648 = vmatprep.subr.mxu0 0.0
    %1649 = vmatpush2.msra.mxu0 0.0
    %1650 = vmatprep.subr.mxu0 0.0
    %1651 = vmatpush2.msra.mxu0 0.0
    %1652 = vmatprep.subr.mxu0 0.0
    %1653 = vmatpush2.msra.mxu0 0.0
    %1654 = vmatprep.subr.mxu0 0.0
    %1655 = vmatpush2.msra.mxu0 0.0
    %1656 = vmatprep.subr.mxu0 0.0
    %1657 = vmatpush2.msra.mxu0 0.0
    %1658 = vmatprep.subr.mxu0 0.0
    %1659 = vmatpush2.msra.mxu0 0.0
    %1660 = vmatprep.mubr.f32.mxu0 0.0
    %1661 = vmatmul.mubr.f32.gmra.mxu0 %v1591
    %v1662 = vpop.f32.mrf.mxu0
    %v1663 = vadd.f32 0.0, %v1662
    %v1664 = vpop.f32.mrf.mxu0
    %1665 = vmatprep.mubr.f32.mxu0 0.0
    %1666 = vmatmul.mubr.f32.gmra.mxu0 %v1594
    %v1667 = vpop.f32.mrf.mxu0
    %v1668 = vadd.f32 0.0, %v1667
    %v1669 = vpop.f32.mrf.mxu0
    %1670 = vdwg.mxu0
    %1671 = vrot.lane.b32.xlu0 %v268, 64
    %v1672 = vpop.permute.xlu0 %1671
    %1673 = vrot.lane.b32.xlu0 %v270, 64
    %v1674 = vpop.permute.xlu0 %1673
    %v1678 = vsel %vm972, %v1145, 0
    %v1681 = vsel %vm972, %v1146, 0
    %1683 = vmatprep.subr.mxu0 0.0
    %1684 = vmatpush1.msra.mxu0 0.0
    %1685 = vmatprep.subr.mxu0 0.0
    %1686 = vmatpush1.msra.mxu0 0.0
    %1687 = vmatprep.subr.mxu0 0.0
    %1688 = vmatpush1.msra.mxu0 0.0
    %1689 = vmatprep.subr.mxu0 0.0
    %1690 = vmatpush1.msra.mxu0 0.0
    %1691 = vmatprep.subr.mxu0 0.0
    %1692 = vmatpush1.msra.mxu0 0.0
    %1693 = vmatprep.subr.mxu0 0.0
    %1694 = vmatpush1.msra.mxu0 0.0
    %1695 = vmatprep.subr.mxu0 0.0
    %1696 = vmatpush1.msra.mxu0 0.0
    %1697 = vmatprep.subr.mxu0 0.0
    %1698 = vmatpush1.msra.mxu0 0.0
    %1699 = vmatprep.subr.mxu0 0.0
    %1700 = vmatpush1.msra.mxu0 0.0
    %1701 = vmatprep.subr.mxu0 0.0
    %1702 = vmatpush1.msra.mxu0 0.0
    %1703 = vmatprep.subr.mxu0 0.0
    %1704 = vmatpush1.msra.mxu0 0.0
    %1705 = vmatprep.subr.mxu0 0.0
    %1706 = vmatpush1.msra.mxu0 0.0
    %1707 = vmatprep.subr.mxu0 0.0
    %1708 = vmatpush1.msra.mxu0 0.0
    %1709 = vmatprep.subr.mxu0 0.0
    %1710 = vmatpush1.msra.mxu0 0.0
    %1711 = vmatprep.subr.mxu0 0.0
    %1712 = vmatpush1.msra.mxu0 %v1674
    %1713 = vmatprep.subr.mxu0 0.0
    %1714 = vmatpush1.msra.mxu0 %v1672
    %1715 = vmatprep.subr.mxu0 0.0
    %1716 = vmatpush2.msra.mxu0 0.0
    %1717 = vmatprep.subr.mxu0 0.0
    %1718 = vmatpush2.msra.mxu0 0.0
    %1719 = vmatprep.subr.mxu0 0.0
    %1720 = vmatpush2.msra.mxu0 0.0
    %1721 = vmatprep.subr.mxu0 0.0
    %1722 = vmatpush2.msra.mxu0 0.0
    %1723 = vmatprep.subr.mxu0 0.0
    %1724 = vmatpush2.msra.mxu0 0.0
    %1725 = vmatprep.subr.mxu0 0.0
    %1726 = vmatpush2.msra.mxu0 0.0
    %1727 = vmatprep.subr.mxu0 0.0
    %1728 = vmatpush2.msra.mxu0 0.0
    %1729 = vmatprep.subr.mxu0 0.0
    %1730 = vmatpush2.msra.mxu0 0.0
    %1731 = vmatprep.subr.mxu0 0.0
    %1732 = vmatpush2.msra.mxu0 0.0
    %1733 = vmatprep.subr.mxu0 0.0
    %1734 = vmatpush2.msra.mxu0 0.0
    %1735 = vmatprep.subr.mxu0 0.0
    %1736 = vmatpush2.msra.mxu0 0.0
    %1737 = vmatprep.subr.mxu0 0.0
    %1738 = vmatpush2.msra.mxu0 0.0
    %1739 = vmatprep.subr.mxu0 0.0
    %1740 = vmatpush2.msra.mxu0 0.0
    %1741 = vmatprep.subr.mxu0 0.0
    %1742 = vmatpush2.msra.mxu0 0.0
    %1743 = vmatprep.subr.mxu0 0.0
    %1744 = vmatpush2.msra.mxu0 0.0
    %1745 = vmatprep.subr.mxu0 0.0
    %1746 = vmatpush2.msra.mxu0 0.0
    %1747 = vmatprep.mubr.f32.mxu0 0.0
    %1748 = vmatmul.mubr.f32.gmra.mxu0 %v1678
    %v1749 = vpop.f32.mrf.mxu0
    %v1750 = vadd.f32 0.0, %v1749
    %v1751 = vpop.f32.mrf.mxu0
    %1752 = vmatprep.mubr.f32.mxu0 0.0
    %1753 = vmatmul.mubr.f32.gmra.mxu0 %v1681
    %v1754 = vpop.f32.mrf.mxu0
    %v1755 = vadd.f32 0.0, %v1754
    %v1756 = vpop.f32.mrf.mxu0
    %1757 = vdwg.mxu0
    %1758 = vrot.lane.b32.xlu0 %v272, 64
    %v1759 = vpop.permute.xlu0 %1758
    %1760 = vrot.lane.b32.xlu0 %v274, 64
    %v1761 = vpop.permute.xlu0 %1760
    %v1765 = vsel %vm972, %v1147, 0
    %v1768 = vsel %vm972, %v1148, 0
    %1770 = vmatprep.subr.mxu0 0.0
    %1771 = vmatpush1.msra.mxu0 0.0
    %1772 = vmatprep.subr.mxu0 0.0
    %1773 = vmatpush1.msra.mxu0 0.0
    %1774 = vmatprep.subr.mxu0 0.0
    %1775 = vmatpush1.msra.mxu0 0.0
    %1776 = vmatprep.subr.mxu0 0.0
    %1777 = vmatpush1.msra.mxu0 0.0
    %1778 = vmatprep.subr.mxu0 0.0
    %1779 = vmatpush1.msra.mxu0 0.0
    %1780 = vmatprep.subr.mxu0 0.0
    %1781 = vmatpush1.msra.mxu0 0.0
    %1782 = vmatprep.subr.mxu0 0.0
    %1783 = vmatpush1.msra.mxu0 0.0
    %1784 = vmatprep.subr.mxu0 0.0
    %1785 = vmatpush1.msra.mxu0 0.0
    %1786 = vmatprep.subr.mxu0 0.0
    %1787 = vmatpush1.msra.mxu0 0.0
    %1788 = vmatprep.subr.mxu0 0.0
    %1789 = vmatpush1.msra.mxu0 0.0
    %1790 = vmatprep.subr.mxu0 0.0
    %1791 = vmatpush1.msra.mxu0 0.0
    %1792 = vmatprep.subr.mxu0 0.0
    %1793 = vmatpush1.msra.mxu0 0.0
    %1794 = vmatprep.subr.mxu0 0.0
    %1795 = vmatpush1.msra.mxu0 0.0
    %1796 = vmatprep.subr.mxu0 0.0
    %1797 = vmatpush1.msra.mxu0 0.0
    %1798 = vmatprep.subr.mxu0 0.0
    %1799 = vmatpush1.msra.mxu0 %v1761
    %1800 = vmatprep.subr.mxu0 0.0
    %1801 = vmatpush1.msra.mxu0 %v1759
    %1802 = vmatprep.subr.mxu0 0.0
    %1803 = vmatpush2.msra.mxu0 0.0
    %1804 = vmatprep.subr.mxu0 0.0
    %1805 = vmatpush2.msra.mxu0 0.0
    %1806 = vmatprep.subr.mxu0 0.0
    %1807 = vmatpush2.msra.mxu0 0.0
    %1808 = vmatprep.subr.mxu0 0.0
    %1809 = vmatpush2.msra.mxu0 0.0
    %1810 = vmatprep.subr.mxu0 0.0
    %1811 = vmatpush2.msra.mxu0 0.0
    %1812 = vmatprep.subr.mxu0 0.0
    %1813 = vmatpush2.msra.mxu0 0.0
    %1814 = vmatprep.subr.mxu0 0.0
    %1815 = vmatpush2.msra.mxu0 0.0
    %1816 = vmatprep.subr.mxu0 0.0
    %1817 = vmatpush2.msra.mxu0 0.0
    %1818 = vmatprep.subr.mxu0 0.0
    %1819 = vmatpush2.msra.mxu0 0.0
    %1820 = vmatprep.subr.mxu0 0.0
    %1821 = vmatpush2.msra.mxu0 0.0
    %1822 = vmatprep.subr.mxu0 0.0
    %1823 = vmatpush2.msra.mxu0 0.0
    %1824 = vmatprep.subr.mxu0 0.0
    %1825 = vmatpush2.msra.mxu0 0.0
    %1826 = vmatprep.subr.mxu0 0.0
    %1827 = vmatpush2.msra.mxu0 0.0
    %1828 = vmatprep.subr.mxu0 0.0
    %1829 = vmatpush2.msra.mxu0 0.0
    %1830 = vmatprep.subr.mxu0 0.0
    %1831 = vmatpush2.msra.mxu0 0.0
    %1832 = vmatprep.subr.mxu0 0.0
    %1833 = vmatpush2.msra.mxu0 0.0
    %1834 = vmatprep.mubr.f32.mxu0 0.0
    %1835 = vmatmul.mubr.f32.gmra.mxu0 %v1765
    %v1836 = vpop.f32.mrf.mxu0
    %v1837 = vadd.f32 0.0, %v1836
    %v1838 = vpop.f32.mrf.mxu0
    %1839 = vmatprep.mubr.f32.mxu0 0.0
    %1840 = vmatmul.mubr.f32.gmra.mxu0 %v1768
    %v1841 = vpop.f32.mrf.mxu0
    %v1842 = vadd.f32 0.0, %v1841
    %v1843 = vpop.f32.mrf.mxu0
    %1844 = vdwg.mxu0
    %1847 = vrot.lane.b32.xlu0 %v1315, 8
    %v1848 = vpop.permute.xlu0 %1847
    %1849 = vrot.lane.b32.xlu0 %v1320, 8
    %v1850 = vpop.permute.xlu0 %1849
    %1855 = vrot.lane.b32.xlu0 %v1402, 16
    %v1856 = vpop.permute.xlu0 %1855
    %1857 = vrot.lane.b32.xlu0 %v1407, 16
    %v1858 = vpop.permute.xlu0 %1857
    %1863 = vrot.lane.b32.xlu0 %v1489, 24
    %v1864 = vpop.permute.xlu0 %1863
    %1865 = vrot.lane.b32.xlu0 %v1494, 24
    %v1866 = vpop.permute.xlu0 %1865
    %v1869 = vsel %vm279, %v1228, %v1848
    %v1870 = vsel %vm279, %v1233, %v1850
    %v1871 = vsel %vm972, %v1869, %v1856
    %v1872 = vsel %vm972, %v1870, %v1858
    %vm1873 = vcmask 195584
    %v1874 = vsel %vm1873, %v1871, %v1864
    %v1875 = vsel %vm1873, %v1872, %v1866
    %1878 = vrot.lane.b32.xlu0 %v1663, 8
    %v1879 = vpop.permute.xlu0 %1878
    %1880 = vrot.lane.b32.xlu0 %v1668, 8
    %v1881 = vpop.permute.xlu0 %1880
    %1886 = vrot.lane.b32.xlu0 %v1750, 16
    %v1887 = vpop.permute.xlu0 %1886
    %1888 = vrot.lane.b32.xlu0 %v1755, 16
    %v1889 = vpop.permute.xlu0 %1888
    %1894 = vrot.lane.b32.xlu0 %v1837, 24
    %v1895 = vpop.permute.xlu0 %1894
    %1896 = vrot.lane.b32.xlu0 %v1842, 24
    %v1897 = vpop.permute.xlu0 %1896
    %v1900 = vsel %vm279, %v1576, %v1879
    %v1901 = vsel %vm279, %v1581, %v1881
    %v1902 = vsel %vm972, %v1900, %v1887
    %v1903 = vsel %vm972, %v1901, %v1889
    %v1904 = vsel %vm1873, %v1902, %v1895
    %v1905 = vsel %vm1873, %v1903, %v1897
    %v1906 = vld [vmem:[%s5] sm:$0xff]
    %v1907 = vld [vmem:[%s5 + $0x8] sm:$0xff]
    %v1908 = vld [vmem:[%s5 + $0x10] sm:$0xff]
    %v1909 = vld [vmem:[%s5 + $0x18] sm:$0xff]
    %v1910 = vld [vmem:[%s6] sm:$0x1]
    %v1912 = vlaneseq
    %v1913 = vshrl.u32 %v1912, 7
    %v1914 = vsub.s32 0, %v1913
    %v1915 = vrot.slane %v1910, %v1914
    %v1918 = vsel %vm65, %v1874, 0
    %v1921 = vsel %vm65, %v1875, 0
    %v1924 = vsel %vm65, %v1904, 0
    %v1927 = vsel %vm65, %v1905, 0
    %1929 = vmatprep.subr.mxu0 0.0
    %1930 = vmatpush1.msra.mxu0 0.0
    %1931 = vmatprep.subr.mxu0 0.0
    %1932 = vmatpush1.msra.mxu0 0.0
    %1933 = vmatprep.subr.mxu0 0.0
    %1934 = vmatpush1.msra.mxu0 0.0
    %1935 = vmatprep.subr.mxu0 0.0
    %1936 = vmatpush1.msra.mxu0 0.0
    %1937 = vmatprep.subr.mxu0 0.0
    %1938 = vmatpush1.msra.mxu0 0.0
    %1939 = vmatprep.subr.mxu0 0.0
    %1940 = vmatpush1.msra.mxu0 0.0
    %1941 = vmatprep.subr.mxu0 0.0
    %1942 = vmatpush1.msra.mxu0 0.0
    %1943 = vmatprep.subr.mxu0 0.0
    %1944 = vmatpush1.msra.mxu0 0.0
    %1945 = vmatprep.subr.mxu0 0.0
    %1946 = vmatpush1.msra.mxu0 0.0
    %1947 = vmatprep.subr.mxu0 0.0
    %1948 = vmatpush1.msra.mxu0 0.0
    %1949 = vmatprep.subr.mxu0 0.0
    %1950 = vmatpush1.msra.mxu0 0.0
    %1951 = vmatprep.subr.mxu0 0.0
    %1952 = vmatpush1.msra.mxu0 0.0
    %1953 = vmatprep.subr.mxu0 0.0
    %1954 = vmatpush1.msra.mxu0 %v1909
    %1955 = vmatprep.subr.mxu0 0.0
    %1956 = vmatpush1.msra.mxu0 %v1908
    %1957 = vmatprep.subr.mxu0 0.0
    %1958 = vmatpush1.msra.mxu0 %v1907
    %1959 = vmatprep.subr.mxu0 0.0
    %1960 = vmatpush1.msra.mxu0 %v1906
    %1961 = vmatprep.subr.mxu0 0.0
    %1962 = vmatpush2.msra.mxu0 0.0
    %1963 = vmatprep.subr.mxu0 0.0
    %1964 = vmatpush2.msra.mxu0 0.0
    %1965 = vmatprep.subr.mxu0 0.0
    %1966 = vmatpush2.msra.mxu0 0.0
    %1967 = vmatprep.subr.mxu0 0.0
    %1968 = vmatpush2.msra.mxu0 0.0
    %1969 = vmatprep.subr.mxu0 0.0
    %1970 = vmatpush2.msra.mxu0 0.0
    %1971 = vmatprep.subr.mxu0 0.0
    %1972 = vmatpush2.msra.mxu0 0.0
    %1973 = vmatprep.subr.mxu0 0.0
    %1974 = vmatpush2.msra.mxu0 0.0
    %1975 = vmatprep.subr.mxu0 0.0
    %1976 = vmatpush2.msra.mxu0 0.0
    %1977 = vmatprep.subr.mxu0 0.0
    %1978 = vmatpush2.msra.mxu0 0.0
    %1979 = vmatprep.subr.mxu0 0.0
    %1980 = vmatpush2.msra.mxu0 0.0
    %1981 = vmatprep.subr.mxu0 0.0
    %1982 = vmatpush2.msra.mxu0 0.0
    %1983 = vmatprep.subr.mxu0 0.0
    %1984 = vmatpush2.msra.mxu0 0.0
    %1985 = vmatprep.subr.mxu0 0.0
    %1986 = vmatpush2.msra.mxu0 0.0
    %1987 = vmatprep.subr.mxu0 0.0
    %1988 = vmatpush2.msra.mxu0 0.0
    %1989 = vmatprep.subr.mxu0 0.0
    %1990 = vmatpush2.msra.mxu0 0.0
    %1991 = vmatprep.subr.mxu0 0.0
    %1992 = vmatpush2.msra.mxu0 0.0
    %1993 = vmatprep.mubr.f32.mxu0 0.0
    %1994 = vmatmul.mubr.f32.gmra.mxu0 %v1918
    %v1995 = vpop.f32.mrf.mxu0
    %v1996 = vadd.f32 %v1915, %v1995
    %v1997 = vpop.f32.mrf.mxu0
    %1998 = vmatprep.mubr.f32.mxu0 0.0
    %1999 = vmatmul.mubr.f32.gmra.mxu0 %v1921
    %v2000 = vpop.f32.mrf.mxu0
    %v2001 = vadd.f32 %v1915, %v2000
    %v2002 = vpop.f32.mrf.mxu0
    %2003 = vmatprep.mubr.f32.mxu0 0.0
    %2004 = vmatmul.mubr.f32.gmra.mxu0 %v1924
    %v2005 = vpop.f32.mrf.mxu0
    %v2006 = vadd.f32 %v1915, %v2005
    %v2007 = vpop.f32.mrf.mxu0
    %2008 = vmatprep.mubr.f32.mxu0 0.0
    %2009 = vmatmul.mubr.f32.gmra.mxu0 %v1927
    %v2010 = vpop.f32.mrf.mxu0
    %v2011 = vadd.f32 %v1915, %v2010
    %v2012 = vpop.f32.mrf.mxu0
    %2013 = vdwg.mxu0
    %v2014 = vadd.f32 %v59, %v1996
    %v2015 = vadd.f32 %v60, %v2001
    %v2016 = vadd.f32 %v61, %v2006
    %v2017 = vadd.f32 %v62, %v2011
    %v2018 = vld [vmem:[%s7] sm:$0x1]
    %v2019 = vld [vmem:[%s8] sm:$0x1]
    %v2020 = vsel %vm65, %v2014, 0.0
    %2021 = vadd.xlane.f32.xlu0 %v2020
    %v2022 = vpop.xlane.xlu0 %2021
    %v2023 = vsel %vm65, %v2015, 0.0
    %2024 = vadd.xlane.f32.xlu0 %v2023
    %v2025 = vpop.xlane.xlu0 %2024
    %v2026 = vsel %vm65, %v2016, 0.0
    %2027 = vadd.xlane.f32.xlu0 %v2026
    %v2028 = vpop.xlane.xlu0 %2027
    %v2029 = vsel %vm65, %v2017, 0.0
    %2030 = vadd.xlane.f32.xlu0 %v2029
    %v2031 = vpop.xlane.xlu0 %2030
    %v2032 = vmul.f32 %v2022, %v78
    %v2033 = vmul.f32 %v2025, %v78
    %v2034 = vmul.f32 %v2028, %v78
    %v2035 = vmul.f32 %v2031, %v78
    %v2036 = vsub.f32 %v2014, %v2032
    %v2037 = vsub.f32 %v2015, %v2033
    %v2038 = vsub.f32 %v2016, %v2034
    %v2039 = vsub.f32 %v2017, %v2035
    %v2040 = vmul.f32 %v2036, %v2036
    %v2041 = vmul.f32 %v2037, %v2037
    %v2042 = vmul.f32 %v2038, %v2038
    %v2043 = vmul.f32 %v2039, %v2039
    %v2044 = vsel %vm65, %v2040, 0.0
    %2045 = vadd.xlane.f32.xlu0 %v2044
    %v2046 = vpop.xlane.xlu0 %2045
    %v2047 = vsel %vm65, %v2041, 0.0
    %2048 = vadd.xlane.f32.xlu0 %v2047
    %v2049 = vpop.xlane.xlu0 %2048
    %v2050 = vsel %vm65, %v2042, 0.0
    %2051 = vadd.xlane.f32.xlu0 %v2050
    %v2052 = vpop.xlane.xlu0 %2051
    %v2053 = vsel %vm65, %v2043, 0.0
    %2054 = vadd.xlane.f32.xlu0 %v2053
    %v2055 = vpop.xlane.xlu0 %2054
    %v2056 = vmul.f32 %v2046, %v78
    %v2057 = vmul.f32 %v2049, %v78
    %v2058 = vmul.f32 %v2052, %v78
    %v2059 = vmul.f32 %v2055, %v78
    %v2060 = vadd.f32 %v2056, 1e-05
    %v2061 = vadd.f32 %v2057, 1e-05
    %v2062 = vadd.f32 %v2058, 1e-05
    %v2063 = vadd.f32 %v2059, 1e-05
    %v2064 = vrsqrt.pop %v2060
    %v2065 = vrsqrt.pop %v2061
    %v2066 = vrsqrt.pop %v2062
    %v2067 = vrsqrt.pop %v2063
    %v2068 = vmul.f32 %v2036, %v2064
    %v2069 = vmul.f32 %v2037, %v2065
    %v2070 = vmul.f32 %v2038, %v2066
    %v2071 = vmul.f32 %v2039, %v2067
    %v2073 = vlaneseq
    %v2074 = vshrl.u32 %v2073, 7
    %v2075 = vsub.s32 0, %v2074
    %v2076 = vrot.slane %v2018, %v2075
    %v2078 = vmul.f32 %v2068, %v2076
    %v2079 = vmul.f32 %v2069, %v2076
    %v2080 = vmul.f32 %v2070, %v2076
    %v2081 = vmul.f32 %v2071, %v2076
    %v2083 = vlaneseq
    %v2084 = vshrl.u32 %v2083, 7
    %v2085 = vsub.s32 0, %v2084
    %v2086 = vrot.slane %v2019, %v2085
    %v2088 = vadd.f32 %v2078, %v2086
    %v2089 = vadd.f32 %v2079, %v2086
    %v2090 = vadd.f32 %v2080, %v2086
    %v2091 = vadd.f32 %v2081, %v2086
    %v2092 = vld [vmem:[#allocation2] sm:$0xff]
    %v2093 = vld [vmem:[#allocation2 + $0x8] sm:$0xff]
    %v2094 = vld [vmem:[#allocation2 + $0x10] sm:$0xff]
    %v2095 = vld [vmem:[#allocation2 + $0x18] sm:$0xff]
    %v2096 = vld [vmem:[%s10] sm:$0x1]
    %v2098 = vlaneseq
    %v2099 = vshrl.u32 %v2098, 7
    %v2100 = vsub.s32 0, %v2099
    %v2101 = vrot.slane %v2096, %v2100
    %v2104 = vsel %vm65, %v2088, 0
    %v2107 = vsel %vm65, %v2089, 0
    %v2110 = vsel %vm65, %v2090, 0
    %v2113 = vsel %vm65, %v2091, 0
    %2115 = vmatprep.subr.mxu0 0.0
    %2116 = vmatpush1.msra.mxu0 0.0
    %2117 = vmatprep.subr.mxu0 0.0
    %2118 = vmatpush1.msra.mxu0 0.0
    %2119 = vmatprep.subr.mxu0 0.0
    %2120 = vmatpush1.msra.mxu0 0.0
    %2121 = vmatprep.subr.mxu0 0.0
    %2122 = vmatpush1.msra.mxu0 0.0
    %2123 = vmatprep.subr.mxu0 0.0
    %2124 = vmatpush1.msra.mxu0 0.0
    %2125 = vmatprep.subr.mxu0 0.0
    %2126 = vmatpush1.msra.mxu0 0.0
    %2127 = vmatprep.subr.mxu0 0.0
    %2128 = vmatpush1.msra.mxu0 0.0
    %2129 = vmatprep.subr.mxu0 0.0
    %2130 = vmatpush1.msra.mxu0 0.0
    %2131 = vmatprep.subr.mxu0 0.0
    %2132 = vmatpush1.msra.mxu0 0.0
    %2133 = vmatprep.subr.mxu0 0.0
    %2134 = vmatpush1.msra.mxu0 0.0
    %2135 = vmatprep.subr.mxu0 0.0
    %2136 = vmatpush1.msra.mxu0 0.0
    %2137 = vmatprep.subr.mxu0 0.0
    %2138 = vmatpush1.msra.mxu0 0.0
    %2139 = vmatprep.subr.mxu0 0.0
    %2140 = vmatpush1.msra.mxu0 %v2095
    %2141 = vmatprep.subr.mxu0 0.0
    %2142 = vmatpush1.msra.mxu0 %v2094
    %2143 = vmatprep.subr.mxu0 0.0
    %2144 = vmatpush1.msra.mxu0 %v2093
    %2145 = vmatprep.subr.mxu0 0.0
    %2146 = vmatpush1.msra.mxu0 %v2092
    %2147 = vmatprep.subr.mxu0 0.0
    %2148 = vmatpush2.msra.mxu0 0.0
    %2149 = vmatprep.subr.mxu0 0.0
    %2150 = vmatpush2.msra.mxu0 0.0
    %2151 = vmatprep.subr.mxu0 0.0
    %2152 = vmatpush2.msra.mxu0 0.0
    %2153 = vmatprep.subr.mxu0 0.0
    %2154 = vmatpush2.msra.mxu0 0.0
    %2155 = vmatprep.subr.mxu0 0.0
    %2156 = vmatpush2.msra.mxu0 0.0
    %2157 = vmatprep.subr.mxu0 0.0
    %2158 = vmatpush2.msra.mxu0 0.0
    %2159 = vmatprep.subr.mxu0 0.0
    %2160 = vmatpush2.msra.mxu0 0.0
    %2161 = vmatprep.subr.mxu0 0.0
    %2162 = vmatpush2.msra.mxu0 0.0
    %2163 = vmatprep.subr.mxu0 0.0
    %2164 = vmatpush2.msra.mxu0 0.0
    %2165 = vmatprep.subr.mxu0 0.0
    %2166 = vmatpush2.msra.mxu0 0.0
    %2167 = vmatprep.subr.mxu0 0.0
    %2168 = vmatpush2.msra.mxu0 0.0
    %2169 = vmatprep.subr.mxu0 0.0
    %2170 = vmatpush2.msra.mxu0 0.0
    %2171 = vmatprep.subr.mxu0 0.0
    %2172 = vmatpush2.msra.mxu0 0.0
    %2173 = vmatprep.subr.mxu0 0.0
    %2174 = vmatpush2.msra.mxu0 0.0
    %2175 = vmatprep.subr.mxu0 0.0
    %2176 = vmatpush2.msra.mxu0 0.0
    %2177 = vmatprep.subr.mxu0 0.0
    %2178 = vmatpush2.msra.mxu0 0.0
    %2179 = vmatprep.mubr.f32.mxu0 0.0
    %2180 = vmatmul.mubr.f32.gmra.mxu0 %v2104
    %v2181 = vpop.f32.mrf.mxu0
    %v2182 = vadd.f32 %v2101, %v2181
    %v2183 = vpop.f32.mrf.mxu0
    %2184 = vmatprep.mubr.f32.mxu0 0.0
    %2185 = vmatmul.mubr.f32.gmra.mxu0 %v2107
    %v2186 = vpop.f32.mrf.mxu0
    %v2187 = vadd.f32 %v2101, %v2186
    %v2188 = vpop.f32.mrf.mxu0
    %2189 = vmatprep.mubr.f32.mxu0 0.0
    %2190 = vmatmul.mubr.f32.gmra.mxu0 %v2110
    %v2191 = vpop.f32.mrf.mxu0
    %v2192 = vadd.f32 %v2101, %v2191
    %v2193 = vpop.f32.mrf.mxu0
    %2194 = vmatprep.mubr.f32.mxu0 0.0
    %2195 = vmatmul.mubr.f32.gmra.mxu0 %v2113
    %v2196 = vpop.f32.mrf.mxu0
    %v2197 = vadd.f32 %v2101, %v2196
    %v2198 = vpop.f32.mrf.mxu0
    %2199 = vdwg.mxu0
    %v2200 = vmul.f32 %v2182, %v2182
    %v2201 = vmul.f32 %v2187, %v2187
    %v2202 = vmul.f32 %v2192, %v2192
    %v2203 = vmul.f32 %v2197, %v2197
    %v2204 = vmul.f32 %v2200, %v2182
    %v2205 = vmul.f32 %v2201, %v2187
    %v2206 = vmul.f32 %v2202, %v2192
    %v2207 = vmul.f32 %v2203, %v2197
    %v2208 = vmul.f32 %v2182, 0.5
    %v2209 = vmul.f32 %v2187, 0.5
    %v2210 = vmul.f32 %v2192, 0.5
    %v2211 = vmul.f32 %v2197, 0.5
    %v2212 = vmul.f32 %v2204, 0.04475
    %v2213 = vmul.f32 %v2205, 0.04475
    %v2214 = vmul.f32 %v2206, 0.04475
    %v2215 = vmul.f32 %v2207, 0.04475
    %v2216 = vadd.f32 %v2182, %v2212
    %v2217 = vadd.f32 %v2187, %v2213
    %v2218 = vadd.f32 %v2192, %v2214
    %v2219 = vadd.f32 %v2197, %v2215
    %v2220 = vmul.f32 %v2216, 0.7978846
    %v2221 = vmul.f32 %v2217, 0.7978846
    %v2222 = vmul.f32 %v2218, 0.7978846
    %v2223 = vmul.f32 %v2219, 0.7978846
    %v2224 = vtanh.pop %v2220
    %v2225 = vtanh.pop %v2221
    %v2226 = vtanh.pop %v2222
    %v2227 = vtanh.pop %v2223
    %v2228 = vadd.f32 %v2224, 1.0
    %v2229 = vadd.f32 %v2225, 1.0
    %v2230 = vadd.f32 %v2226, 1.0
    %v2231 = vadd.f32 %v2227, 1.0
    %v2232 = vmul.f32 %v2208, %v2228
    %v2233 = vmul.f32 %v2209, %v2229
    %v2234 = vmul.f32 %v2210, %v2230
    %v2235 = vmul.f32 %v2211, %v2231
    %v2236 = vld [vmem:[%s11] sm:$0xff]
    %v2237 = vld [vmem:[%s11 + $0x8] sm:$0xff]
    %v2238 = vld [vmem:[%s11 + $0x10] sm:$0xff]
    %v2239 = vld [vmem:[%s11 + $0x18] sm:$0xff]
    %v2240 = vld [vmem:[%s11 + $0x20] sm:$0xff]
    %v2241 = vld [vmem:[%s11 + $0x28] sm:$0xff]
    %v2242 = vld [vmem:[%s11 + $0x30] sm:$0xff]
    %v2243 = vld [vmem:[%s11 + $0x38] sm:$0xff]
    %v2244 = vld [vmem:[%s12] sm:$0x1]
    %v2246 = vlaneseq
    %v2247 = vshrl.u32 %v2246, 7
    %v2248 = vsub.s32 0, %v2247
    %v2249 = vrot.slane %v2244, %v2248
    %vm2251 = vcmask 523264
    %v2253 = vsel %vm2251, %v2232, 0
    %v2256 = vsel %vm2251, %v2233, 0
    %v2259 = vsel %vm2251, %v2234, 0
    %v2262 = vsel %vm2251, %v2235, 0
    %2264 = vmatprep.subr.mxu0 0.0
    %2265 = vmatpush1.msra.mxu0 0.0
    %2266 = vmatprep.subr.mxu0 0.0
    %2267 = vmatpush1.msra.mxu0 0.0
    %2268 = vmatprep.subr.mxu0 0.0
    %2269 = vmatpush1.msra.mxu0 0.0
    %2270 = vmatprep.subr.mxu0 0.0
    %2271 = vmatpush1.msra.mxu0 0.0
    %2272 = vmatprep.subr.mxu0 0.0
    %2273 = vmatpush1.msra.mxu0 0.0
    %2274 = vmatprep.subr.mxu0 0.0
    %2275 = vmatpush1.msra.mxu0 0.0
    %2276 = vmatprep.subr.mxu0 0.0
    %2277 = vmatpush1.msra.mxu0 0.0
    %2278 = vmatprep.subr.mxu0 0.0
    %2279 = vmatpush1.msra.mxu0 0.0
    %2280 = vmatprep.subr.mxu0 0.0
    %2281 = vmatpush1.msra.mxu0 %v2243
    %2282 = vmatprep.subr.mxu0 0.0
    %2283 = vmatpush1.msra.mxu0 %v2242
    %2284 = vmatprep.subr.mxu0 0.0
    %2285 = vmatpush1.msra.mxu0 %v2241
    %2286 = vmatprep.subr.mxu0 0.0
    %2287 = vmatpush1.msra.mxu0 %v2240
    %2288 = vmatprep.subr.mxu0 0.0
    %2289 = vmatpush1.msra.mxu0 %v2239
    %2290 = vmatprep.subr.mxu0 0.0
    %2291 = vmatpush1.msra.mxu0 %v2238
    %2292 = vmatprep.subr.mxu0 0.0
    %2293 = vmatpush1.msra.mxu0 %v2237
    %2294 = vmatprep.subr.mxu0 0.0
    %2295 = vmatpush1.msra.mxu0 %v2236
    %2296 = vmatprep.subr.mxu0 0.0
    %2297 = vmatpush2.msra.mxu0 0.0
    %2298 = vmatprep.subr.mxu0 0.0
    %2299 = vmatpush2.msra.mxu0 0.0
    %2300 = vmatprep.subr.mxu0 0.0
    %2301 = vmatpush2.msra.mxu0 0.0
    %2302 = vmatprep.subr.mxu0 0.0
    %2303 = vmatpush2.msra.mxu0 0.0
    %2304 = vmatprep.subr.mxu0 0.0
    %2305 = vmatpush2.msra.mxu0 0.0
    %2306 = vmatprep.subr.mxu0 0.0
    %2307 = vmatpush2.msra.mxu0 0.0
    %2308 = vmatprep.subr.mxu0 0.0
    %2309 = vmatpush2.msra.mxu0 0.0
    %2310 = vmatprep.subr.mxu0 0.0
    %2311 = vmatpush2.msra.mxu0 0.0
    %2312 = vmatprep.subr.mxu0 0.0
    %2313 = vmatpush2.msra.mxu0 0.0
    %2314 = vmatprep.subr.mxu0 0.0
    %2315 = vmatpush2.msra.mxu0 0.0
    %2316 = vmatprep.subr.mxu0 0.0
    %2317 = vmatpush2.msra.mxu0 0.0
    %2318 = vmatprep.subr.mxu0 0.0
    %2319 = vmatpush2.msra.mxu0 0.0
    %2320 = vmatprep.subr.mxu0 0.0
    %2321 = vmatpush2.msra.mxu0 0.0
    %2322 = vmatprep.subr.mxu0 0.0
    %2323 = vmatpush2.msra.mxu0 0.0
    %2324 = vmatprep.subr.mxu0 0.0
    %2325 = vmatpush2.msra.mxu0 0.0
    %2326 = vmatprep.subr.mxu0 0.0
    %2327 = vmatpush2.msra.mxu0 0.0
    %2328 = vmatprep.mubr.f32.mxu0 0.0
    %2329 = vmatmul.mubr.f32.gmra.mxu0 %v2253
    %v2330 = vpop.f32.mrf.mxu0
    %v2331 = vadd.f32 %v2249, %v2330
    %v2332 = vpop.f32.mrf.mxu0
    %2333 = vmatprep.mubr.f32.mxu0 0.0
    %2334 = vmatmul.mubr.f32.gmra.mxu0 %v2256
    %v2335 = vpop.f32.mrf.mxu0
    %v2336 = vadd.f32 %v2249, %v2335
    %v2337 = vpop.f32.mrf.mxu0
    %2338 = vmatprep.mubr.f32.mxu0 0.0
    %2339 = vmatmul.mubr.f32.gmra.mxu0 %v2259
    %v2340 = vpop.f32.mrf.mxu0
    %v2341 = vadd.f32 %v2249, %v2340
    %v2342 = vpop.f32.mrf.mxu0
    %2343 = vmatprep.mubr.f32.mxu0 0.0
    %2344 = vmatmul.mubr.f32.gmra.mxu0 %v2262
    %v2345 = vpop.f32.mrf.mxu0
    %v2346 = vadd.f32 %v2249, %v2345
    %v2347 = vpop.f32.mrf.mxu0
    %2348 = vdwg.mxu0
    %v2349 = vadd.f32 %v2014, %v2331
    %v2350 = vadd.f32 %v2015, %v2336
    %v2351 = vadd.f32 %v2016, %v2341
    %v2352 = vadd.f32 %v2017, %v2346
    %2353 = vst.msk [vmem:[#allocation5] sm:$0xff] %vm65, %v2349
    %2354 = vst.msk [vmem:[#allocation5 + $0x8] sm:$0xff] %vm65, %v2350
    %2355 = vst.msk [vmem:[#allocation5 + $0x10] sm:$0xff] %vm65, %v2351
    %2356 = vst.msk [vmem:[#allocation5 + $0x18] sm:$0xff] %vm65, %v2352
    // Predicated region
    $region58: #{tpu_custom_call.1} parent=1 // pred_check
      _
    $region59: #{tpu_custom_call.1} parent=1 // pred_check_branch
      %2358 = sbr.rel (0) target = $region61
    $region60: #{tpu_custom_call.1} parent=1 // pred_region
      %s2360 = ssub.s32 512, 512
      %2361 = vsyncadd [#allocation4], %s2360
      %s2362 = sshll.u32 [#allocation5], 4
      %s2363 = int_to_ptr.vmem [resolvable:$true] %s2362
      %2368 = dma.vmem_to_hbm [thread:$0]  %s2363, 512, %s13, [#allocation4], 128, 128, 8
    $region61: #{tpu_custom_call.1} parent=1 // pred_fallthru
      _
    // Predicated region
    $region62: #{tpu_custom_call.1} parent=1 // pred_check
      _
    $region63: #{tpu_custom_call.1} parent=1 // pred_check_branch
      %2370 = sbr.rel (0) target = $region65
    $region64: #{tpu_custom_call.1} parent=1 // pred_region
      %2371 = dma.done [#allocation4], 512
    $region65: #{tpu_custom_call.1} parent=1 // pred_fallthru
      _
    %2372 = vsyncpa [#allocation3], 1
    %2373 = vsyncpa [#allocation4], 1

</llo_original>
